<compile_context>
chip_gen: v5e
topology: v5e:2x2
jax: 0.10.0
libtpu: 0.0.40
codegen_flags: <defaults>
</compile_context>

<pallas_src>
import jax
import jax.numpy as jnp
from jax.experimental import pallas as pl
from jax.experimental.pallas import tpu as pltpu

PADD_INDEX = 2                      # matches padding_idx=2 / global PADD_index
NEG = jnp.float32(-1e30)            # finite "-inf": avoids NaN on all-PADD rows
LANE = 128


def _rup(n, m=LANE):
    return ((n + m - 1) // m) * m


def _pad_to(x, axis, target):
    axis = axis % x.ndim
    pad = target - x.shape[axis]
    if pad <= 0:
        return x
    widths = [(0, 0)] * x.ndim
    widths[axis] = (0, pad)
    return jnp.pad(x, widths)


def _const_spec(arr):
    """Full-array block whose block index never changes -> DMA'd once, stays in VMEM."""
    zeros = (0,) * arr.ndim
    return pl.BlockSpec(arr.shape, lambda t, _z=zeros: _z)


def attn_decoder_step_kernel(
    emb_ref,      # (B, H)        per-step embedded words (leading T dim squeezed)
    enc_ref,      # (B, L, D2)    encoder outputs, batch-major   [resident]
    mask_ref,     # (B, L)        additive attention mask        [resident]
    h0_ref,       # (4, B, D2)    initial hidden state           [resident]
    c0_ref,       # (4, B, D2)    initial cell state              [resident]
    w_ih_ref,     # (4, D2, 4G)   W_ih^T stacked (serial-chain matmuls)
    w_hh012_ref,  # (3, D2, 4G)   W_hh^T layers 0..2
    w_h3_ref,     # (D2, 4G+D2)   [W_hh3^T | Ua]       (shared-LHS fusion)
    w_ctx_ref,    # (D2, VP+D2)   [out_wc  | comb_wc]  (shared-LHS fusion)
    w_emb_ref,    # (H,  VP+D2)   [out_we  | comb_we]  (shared-LHS fusion)
    w_h4_ref,     # (D2, VP)      out weight, h4 slice, transposed
    gate_b_ref,   # (4, 1, 4G)    b_ih + b_hh fused
    comb_b_ref,   # (1, D2)       attn_combine bias
    out_b_ref,    # (1, VP)       out bias (padded vocab cols = NEG)
    probs_ref,    # (B, VP)       per-step output
    attn_ref,     # (B, L)        per-step output
    h_ref,        # (4, B, D2)    carried state (resident output block)
    c_ref,        # (4, B, D2)    carried state (resident output block)
):
    t = pl.program_id(0)
    G4 = gate_b_ref.shape[-1]
    G = G4 // 4
    VP = out_b_ref.shape[-1]

    # ---- state init on the first decode step (resident output blocks carry h/c) ----
    @pl.when(t == 0)
    def _():
        h_ref[...] = h0_ref[...]
        c_ref[...] = c0_ref[...]

    emb = emb_ref[...]
    enc = enc_ref[...]
    h_prev = h_ref[...]
    c_prev = c_ref[...]

    # ---- chain-independent work (issued before the serial LSTM chain) ----
    # h[3]: ONE fused matmul gives both the layer-3 recurrent gates and Ua projection
    h3_proj = jnp.dot(h_prev[3], w_h3_ref[...], preferred_element_type=jnp.float32)
    rec3 = h3_proj[:, :G4] + gate_b_ref[3]
    hW = h3_proj[:, G4:]                                             # (B, D2)

    # attention via VPU broadcast-multiply + reduce (MXU useless at B=2, L=8)
    scores = jnp.sum(hW[:, None, :] * enc, axis=-1) + mask_ref[...]  # (B, L)
    attn = jax.nn.softmax(scores, axis=-1)
    attn_ref[...] = attn
    context = jnp.sum(attn[:, :, None] * enc, axis=1)                # (B, D2)

    # shared-LHS fused matmuls: [out | combine] columns in one pass each
    ctx_proj = jnp.dot(context, w_ctx_ref[...], preferred_element_type=jnp.float32)
    emb_proj = jnp.dot(emb, w_emb_ref[...], preferred_element_type=jnp.float32)
    lstm_in = ctx_proj[:, VP:] + emb_proj[:, VP:] + comb_b_ref[...]          # (B, D2)
    out_partial = ctx_proj[:, :VP] + emb_proj[:, :VP] + out_b_ref[...]       # (B, VP)

    # recurrent gate contributions + fused biases, hoisted off the LSTM chain
    rec0 = jnp.dot(h_prev[0], w_hh012_ref[0], preferred_element_type=jnp.float32) + gate_b_ref[0]
    rec1 = jnp.dot(h_prev[1], w_hh012_ref[1], preferred_element_type=jnp.float32) + gate_b_ref[1]
    rec2 = jnp.dot(h_prev[2], w_hh012_ref[2], preferred_element_type=jnp.float32) + gate_b_ref[2]

    # ---- serial LSTM chain: a single x @ W_ih matmul per cell on the critical path ----
    def cell(x, w_ih, rec, c_in):
        gates = jnp.dot(x, w_ih, preferred_element_type=jnp.float32) + rec   # (B, 4G)
        i = jax.nn.sigmoid(gates[:, 0 * G:1 * G])
        f = jax.nn.sigmoid(gates[:, 1 * G:2 * G])
        g = jnp.tanh(gates[:, 2 * G:3 * G])
        o = jax.nn.sigmoid(gates[:, 3 * G:4 * G])
        c_new = f * c_in + i * g
        return o * jnp.tanh(c_new), c_new

    h1, c1 = cell(lstm_in, w_ih_ref[0], rec0, c_prev[0])
    h2, c2 = cell(h1, w_ih_ref[1], rec1, c_prev[1])
    h3, c3 = cell(h2, w_ih_ref[2], rec2, c_prev[2])
    h4, c4 = cell(h2 + h3, w_ih_ref[3], rec3, c_prev[3])

    # out(cat(h4, context, emb)) = h4 @ Wh + precomputed(context/emb/bias)
    logits = out_partial + jnp.dot(h4, w_h4_ref[...], preferred_element_type=jnp.float32)
    probs_ref[...] = jax.nn.softmax(logits, axis=-1)

    # carry state to the next grid step
    h_ref[0] = h1
    h_ref[1] = h2
    h_ref[2] = h3
    h_ref[3] = h4
    c_ref[0] = c1
    c_ref[1] = c2
    c_ref[2] = c3
    c_ref[3] = c4


def prepare_params(params, hidden_size):
    """One-time (decode-loop-invariant) weight prep: transpose/slice/fuse/pack.

    Contraction / gate dims stay at their natural widths (D2=2H, G=2H); only the
    vocab (stored lane) dim is padded to 128 with the NEG-bias softmax trick.
    """
    H = hidden_size
    D2 = 2 * H
    V = params["out_w"].shape[0]
    VP = _rup(V)

    comb_w = params["comb_w"]                       # (2H, 3H)  PyTorch (out, in)
    out_w = params["out_w"]                         # (V, 5H)

    comb_we = comb_w[:, :H].T                       # (H, D2)
    comb_wc = comb_w[:, H:].T                       # (D2, D2)
    out_wh = _pad_to(out_w[:, :D2].T, 1, VP)        # (D2, VP)  zero-padded vocab cols
    out_wc = _pad_to(out_w[:, D2:2 * D2].T, 1, VP)  # (D2, VP)
    out_we = _pad_to(out_w[:, 2 * D2:].T, 1, VP)    # (H, VP)

    wih_t = jnp.transpose(params["wih"], (0, 2, 1))  # (4, D2, 4G)
    whh_t = jnp.transpose(params["whh"], (0, 2, 1))  # (4, D2, 4G)
    gate_b = params["bih"] + params["bhh"]           # (4, 1, 4G)  fused biases

    out_b = params["out_b"]                          # (1, V)
    if VP > V:
        out_b = jnp.concatenate(
            [out_b, jnp.full((1, VP - V), NEG, jnp.float32)], axis=1)

    # shared-LHS fused RHS slabs (128-aligned leading chunk first)
    w_h3 = jnp.concatenate([whh_t[3], params["ua_w"]], axis=1)    # (D2, 4G + D2)
    w_ctx = jnp.concatenate([out_wc, comb_wc], axis=1)            # (D2, VP + D2)
    w_emb = jnp.concatenate([out_we, comb_we], axis=1)            # (H,  VP + D2)

    return dict(
        H=H, D2=D2, V=V, VP=VP,
        emb_table=params["emb_table"],               # (V, H)  gathered in wrapper
        w_ih=wih_t,                                  # (4, D2, 4G)
        w_hh012=whh_t[:3],                           # (3, D2, 4G)
        w_h3=w_h3, w_ctx=w_ctx, w_emb=w_emb,
        w_h4=out_wh,                                 # (D2, VP)
        gate_b=gate_b,                               # (4, 1, 4G)
        comb_b=params["comb_b"],                     # (1, D2)
        out_b=out_b,                                 # (1, VP)
    )


def attn_decoder_decode(words, encoder_outputs, input_batch, h, c, kp):
    """Fused T-step decode (teacher-forced word ids). Each step == module forward.

    words:           (T, B) int32
    encoder_outputs: (L, B, 2H) float32  (seq-major like PyTorch)
    input_batch:     (L, B) int32
    h, c:            (4, 1, B, 2H) float32
    returns (probs (T,B,V), (h_out (4,1,B,2H), c_out (4,1,B,2H)), attn (T,B,L))
    """
    T, B = words.shape
    L = encoder_outputs.shape[0]
    H, D2, V, VP = kp["H"], kp["D2"], kp["V"], kp["VP"]

    # once-per-sequence wrapper glue (loop-invariant)
    embedded = kp["emb_table"][words]                                  # (T, B, H)
    # TODO(synk): dropout on embeddings omitted (eval-mode identity).
    enc = jnp.transpose(encoder_outputs, (1, 0, 2))                    # (B, L, D2)
    mask = jnp.where(jnp.transpose(input_batch, (1, 0)) == PADD_INDEX,
                     NEG, jnp.float32(0.0))                            # (B, L)
    h0 = h[:, 0]                                                       # (4, B, D2)
    c0 = c[:, 0]

    out_shapes = (
        jax.ShapeDtypeStruct((T, B, VP), jnp.float32),   # probs (padded vocab)
        jax.ShapeDtypeStruct((T, B, L), jnp.float32),    # attention weights
        jax.ShapeDtypeStruct((4, B, D2), jnp.float32),   # final h
        jax.ShapeDtypeStruct((4, B, D2), jnp.float32),   # final c
    )

    in_specs = [
        pl.BlockSpec((None, B, H), lambda t: (t, 0, 0)),  # embedded: streamed per step
        _const_spec(enc),
        _const_spec(mask),
        _const_spec(h0),
        _const_spec(c0),
        _const_spec(kp["w_ih"]),
        _const_spec(kp["w_hh012"]),
        _const_spec(kp["w_h3"]),
        _const_spec(kp["w_ctx"]),
        _const_spec(kp["w_emb"]),
        _const_spec(kp["w_h4"]),
        _const_spec(kp["gate_b"]),
        _const_spec(kp["comb_b"]),
        _const_spec(kp["out_b"]),
    ]
    out_specs = (
        pl.BlockSpec((None, B, VP), lambda t: (t, 0, 0)),
        pl.BlockSpec((None, B, L), lambda t: (t, 0, 0)),
        pl.BlockSpec((4, B, D2), lambda t: (0, 0, 0)),    # resident: carries h state
        pl.BlockSpec((4, B, D2), lambda t: (0, 0, 0)),    # resident: carries c state
    )

    probs_p, attn, h_out, c_out = pl.pallas_call(
        attn_decoder_step_kernel,
        out_shape=out_shapes,
        grid=(T,),
        in_specs=in_specs,
        out_specs=out_specs,
        compiler_params=pltpu.CompilerParams(dimension_semantics=("arbitrary",)),
    )(
        embedded, enc, mask, h0, c0,
        kp["w_ih"], kp["w_hh012"], kp["w_h3"], kp["w_ctx"], kp["w_emb"], kp["w_h4"],
        kp["gate_b"], kp["comb_b"], kp["out_b"],
    )

    probs = probs_p[..., :V]                      # slice padded vocab once, at the end
    return probs, (h_out[:, None], c_out[:, None]), attn


def attn_decoder_forward(word_batch, encoder_outputs, input_batch, h, c, kp):
    """Single-step forward matching AttnDecoderRNN.forward (T=1 of the fused decode)."""
    probs, (h_out, c_out), attn = attn_decoder_decode(
        word_batch, encoder_outputs, input_batch, h, c, kp)
    return probs[0], (h_out, c_out), attn[0]


def reference_forward(word_batch, encoder_outputs, input_batch, h, c, params):
    """Pure-JAX single-step reference (same semantics, unpadded PyTorch-layout weights)."""
    embedded = params["emb_table"][word_batch[0]]
    enc = jnp.transpose(encoder_outputs, (1, 0, 2))
    inp = jnp.transpose(input_batch, (1, 0))
    h_all, c_all = h[:, 0], c[:, 0]
    H2 = h_all.shape[-1]

    hW = h_all[3] @ params["ua_w"]
    m = jnp.sum(hW[:, None, :] * enc, axis=-1)
    scores = jnp.where(inp == PADD_INDEX, NEG, m)
    attn = jax.nn.softmax(scores, axis=-1)
    context = jnp.sum(attn[:, :, None] * enc, axis=1)
    lstm_in = jnp.concatenate([embedded, context], -1) @ params["comb_w"].T + params["comb_b"]

    def cell(x, h0, c0, k):
        gates = (x @ params["wih"][k].T + params["bih"][k]
                 + h0 @ params["whh"][k].T + params["bhh"][k])
        i = jax.nn.sigmoid(gates[:, 0 * H2:1 * H2])
        f = jax.nn.sigmoid(gates[:, 1 * H2:2 * H2])
        g = jnp.tanh(gates[:, 2 * H2:3 * H2])
        o = jax.nn.sigmoid(gates[:, 3 * H2:4 * H2])
        c1 = f * c0 + i * g
        return o * jnp.tanh(c1), c1

    h1, c1 = cell(lstm_in, h_all[0], c_all[0], 0)
    h2, c2 = cell(h1, h_all[1], c_all[1], 1)
    h3, c3 = cell(h2, h_all[2], c_all[2], 2)
    h4, c4 = cell(h2 + h3, h_all[3], c_all[3], 3)
    out_in = jnp.concatenate([h4, context, embedded], -1)
    probs = jax.nn.softmax(out_in @ params["out_w"].T + params["out_b"], axis=-1)
    return probs, jnp.stack([h1, h2, h3, h4]), jnp.stack([c1, c2, c3, c4]), attn


def init_params(key, hidden_size, output_size):
    H, V = hidden_size, output_size
    ks = jax.random.split(key, 12)
    s = 0.1
    emb_table = s * jax.random.normal(ks[0], (V, H), jnp.float32)
    emb_table = emb_table.at[PADD_INDEX].set(0.0)  # padding_idx=2
    return dict(
        emb_table=emb_table,
        ua_w=s * jax.random.normal(ks[1], (2 * H, 2 * H), jnp.float32),
        comb_w=s * jax.random.normal(ks[2], (2 * H, 3 * H), jnp.float32),
        comb_b=s * jax.random.normal(ks[3], (1, 2 * H), jnp.float32),
        wih=s * jax.random.normal(ks[4], (4, 8 * H, 2 * H), jnp.float32),
        whh=s * jax.random.normal(ks[5], (4, 8 * H, 2 * H), jnp.float32),
        bih=s * jax.random.normal(ks[6], (4, 1, 8 * H), jnp.float32),
        bhh=s * jax.random.normal(ks[7], (4, 1, 8 * H), jnp.float32),
        out_w=s * jax.random.normal(ks[8], (V, 5 * H), jnp.float32),
        out_b=s * jax.random.normal(ks[9], (1, V), jnp.float32),
    )


if __name__ == "__main__":
    H = 32          # hidden_size
    V = 32          # output_size (vocab)
    B = 2           # batch_size
    L = 8           # max_length
    T = 6           # fused decode steps (teacher-forced)

    key = jax.random.PRNGKey(0)
    k_par, k_word, k_enc, k_inp, k_h, k_c = jax.random.split(key, 6)

    params = init_params(k_par, H, V)
    kparams = prepare_params(params, H)   # one-time weight prep (loop-invariant)

    words = jax.random.randint(k_word, (T, B), 0, V, jnp.int32)
    encoder_outputs = jax.random.normal(k_enc, (L, B, 2 * H), jnp.float32)
    input_batch = jax.random.randint(k_inp, (L, B), 3, V, jnp.int32)
    # force some PADD positions so the mask path is exercised
    input_batch = input_batch.at[L - 2:].set(PADD_INDEX)
    h0 = 0.1 * jax.random.normal(k_h, (4, 1, B, 2 * H), jnp.float32)
    c0 = 0.1 * jax.random.normal(k_c, (4, 1, B, 2 * H), jnp.float32)

    # ---- fused multi-step decode (one pallas_call for all T steps) ----
    probs, (h_out, c_out), attn = attn_decoder_decode(
        words, encoder_outputs, input_batch, h0, c0, kparams)
    jax.block_until_ready((probs, h_out, c_out, attn))

    # ---- correctness: chained pure-JAX reference over the same T steps ----
    h_state, c_state = h0[:, 0], c0[:, 0]
    ref_probs, ref_attn = [], []
    for t in range(T):
        p, hs, cs, a = reference_forward(
            words[t:t + 1], encoder_outputs, input_batch,
            h_state[:, None], c_state[:, None], params)
        ref_probs.append(p)
        ref_attn.append(a)
        h_state, c_state = hs, cs

    assert jnp.allclose(probs, jnp.stack(ref_probs), atol=1e-4, rtol=1e-4)
    assert jnp.allclose(attn, jnp.stack(ref_attn), atol=1e-4, rtol=1e-4)
    assert jnp.allclose(h_out[:, 0], h_state, atol=1e-4, rtol=1e-4)
    assert jnp.allclose(c_out[:, 0], c_state, atol=1e-4, rtol=1e-4)
    assert jnp.allclose(jnp.sum(probs, -1), 1.0, atol=1e-4)

    # ---- single-step forward (exact module semantics, T=1 special case) ----
    p1, (h1o, c1o), a1 = attn_decoder_forward(
        words[:1], encoder_outputs, input_batch, h0, c0, kparams)
    rp1, rh1, rc1, ra1 = reference_forward(
        words[:1], encoder_outputs, input_batch, h0, c0, params)
    jax.block_until_ready((p1, h1o, c1o, a1))
    assert jnp.allclose(p1, rp1, atol=1e-4, rtol=1e-4)
    assert jnp.allclose(a1, ra1, atol=1e-4, rtol=1e-4)
    assert jnp.allclose(h1o[:, 0], rh1, atol=1e-4, rtol=1e-4)
    assert jnp.allclose(c1o[:, 0], rc1, atol=1e-4, rtol=1e-4)

    print("KERNEL_OK")
</pallas_src>

<mosaic_0001>
module attributes {stable_mosaic.version = 11 : i64} {
  func.func @attn_decoder_step_kernel(%arg0: i32, %arg1: memref<1x2x32xf32, #tpu.memory_space<vmem>>, %arg2: memref<2x8x64xf32, #tpu.memory_space<vmem>>, %arg3: memref<2x8xf32, #tpu.memory_space<vmem>>, %arg4: memref<4x2x64xf32, #tpu.memory_space<vmem>>, %arg5: memref<4x2x64xf32, #tpu.memory_space<vmem>>, %arg6: memref<4x64x256xf32, #tpu.memory_space<vmem>>, %arg7: memref<3x64x256xf32, #tpu.memory_space<vmem>>, %arg8: memref<64x320xf32, #tpu.memory_space<vmem>>, %arg9: memref<64x192xf32, #tpu.memory_space<vmem>>, %arg10: memref<32x192xf32, #tpu.memory_space<vmem>>, %arg11: memref<64x128xf32, #tpu.memory_space<vmem>>, %arg12: memref<4x1x256xf32, #tpu.memory_space<vmem>>, %arg13: memref<1x64xf32, #tpu.memory_space<vmem>>, %arg14: memref<1x128xf32, #tpu.memory_space<vmem>>, %arg15: memref<1x2x128xf32, #tpu.memory_space<vmem>>, %arg16: memref<1x2x8xf32, #tpu.memory_space<vmem>>, %arg17: memref<4x2x64xf32, #tpu.memory_space<vmem>>, %arg18: memref<4x2x64xf32, #tpu.memory_space<vmem>>) attributes {dimension_semantics = [#tpu.dimension_semantics<arbitrary>], iteration_bounds = array<i64: 6>, scalar_prefetch = 0 : i64, scratch_operands = 0 : i64, tpu.core_type = #tpu.core_type<tc>, window_params = [{transform_indices = @transform_0, window_bounds = array<i64: 1, 2, 32>}, {pipeline_mode = #tpu.pipeline_mode<synchronous>, transform_indices = @transform_1, window_bounds = array<i64: 2, 8, 64>}, {pipeline_mode = #tpu.pipeline_mode<synchronous>, transform_indices = @transform_2, window_bounds = array<i64: 2, 8>}, {pipeline_mode = #tpu.pipeline_mode<synchronous>, transform_indices = @transform_3, window_bounds = array<i64: 4, 2, 64>}, {pipeline_mode = #tpu.pipeline_mode<synchronous>, transform_indices = @transform_4, window_bounds = array<i64: 4, 2, 64>}, {pipeline_mode = #tpu.pipeline_mode<synchronous>, transform_indices = @transform_5, window_bounds = array<i64: 4, 64, 256>}, {pipeline_mode = #tpu.pipeline_mode<synchronous>, transform_indices = @transform_6, window_bounds = array<i64: 3, 64, 256>}, {pipeline_mode = #tpu.pipeline_mode<synchronous>, transform_indices = @transform_7, window_bounds = array<i64: 64, 320>}, {pipeline_mode = #tpu.pipeline_mode<synchronous>, transform_indices = @transform_8, window_bounds = array<i64: 64, 192>}, {pipeline_mode = #tpu.pipeline_mode<synchronous>, transform_indices = @transform_9, window_bounds = array<i64: 32, 192>}, {pipeline_mode = #tpu.pipeline_mode<synchronous>, transform_indices = @transform_10, window_bounds = array<i64: 64, 128>}, {pipeline_mode = #tpu.pipeline_mode<synchronous>, transform_indices = @transform_11, window_bounds = array<i64: 4, 1, 256>}, {pipeline_mode = #tpu.pipeline_mode<synchronous>, transform_indices = @transform_12, window_bounds = array<i64: 1, 64>}, {pipeline_mode = #tpu.pipeline_mode<synchronous>, transform_indices = @transform_13, window_bounds = array<i64: 1, 128>}, {transform_indices = @transform_14, window_bounds = array<i64: 1, 2, 128>}, {transform_indices = @transform_15, window_bounds = array<i64: 1, 2, 8>}, {pipeline_mode = #tpu.pipeline_mode<synchronous>, transform_indices = @transform_16, window_bounds = array<i64: 4, 2, 64>}, {pipeline_mode = #tpu.pipeline_mode<synchronous>, transform_indices = @transform_17, window_bounds = array<i64: 4, 2, 64>}]} {
    %c0_i32 = arith.constant 0 : i32
    %0 = arith.cmpi eq, %arg0, %c0_i32 : i32
    %1 = arith.extui %0 : i1 to i32
    %c0_i32_0 = arith.constant 0 : i32
    %2 = arith.cmpi ne, %1, %c0_i32_0 : i32
    scf.if %2 {
      %c0_116 = arith.constant 0 : index
      %c0_117 = arith.constant 0 : index
      %c0_118 = arith.constant 0 : index
      %251 = vector.load %arg4[%c0_116, %c0_117, %c0_118] : memref<4x2x64xf32, #tpu.memory_space<vmem>>, vector<4x2x64xf32>
      %c0_119 = arith.constant 0 : index
      %c0_120 = arith.constant 0 : index
      %c0_121 = arith.constant 0 : index
      %252 = vector.load %arg17[%c0_119, %c0_120, %c0_121] : memref<4x2x64xf32, #tpu.memory_space<vmem>>, vector<4x2x64xf32>
      tpu.vector_store %arg17[%c0_119, %c0_120, %c0_121], %251 {strides = array<i32>} : memref<4x2x64xf32, #tpu.memory_space<vmem>>, vector<4x2x64xf32>,
      %c0_122 = arith.constant 0 : index
      %c0_123 = arith.constant 0 : index
      %c0_124 = arith.constant 0 : index
      %253 = vector.load %arg5[%c0_122, %c0_123, %c0_124] : memref<4x2x64xf32, #tpu.memory_space<vmem>>, vector<4x2x64xf32>
      %c0_125 = arith.constant 0 : index
      %c0_126 = arith.constant 0 : index
      %c0_127 = arith.constant 0 : index
      %254 = vector.load %arg18[%c0_125, %c0_126, %c0_127] : memref<4x2x64xf32, #tpu.memory_space<vmem>>, vector<4x2x64xf32>
      tpu.vector_store %arg18[%c0_125, %c0_126, %c0_127], %253 {strides = array<i32>} : memref<4x2x64xf32, #tpu.memory_space<vmem>>, vector<4x2x64xf32>,
    } else {
    }
    %c0 = arith.constant 0 : index
    %c0_1 = arith.constant 0 : index
    %c0_2 = arith.constant 0 : index
    %3 = vector.load %arg1[%c0, %c0_1, %c0_2] : memref<1x2x32xf32, #tpu.memory_space<vmem>>, vector<1x2x32xf32>
    %4 = vector.shape_cast %3 : vector<1x2x32xf32> to vector<2x32xf32>
    %c0_3 = arith.constant 0 : index
    %c0_4 = arith.constant 0 : index
    %c0_5 = arith.constant 0 : index
    %5 = vector.load %arg2[%c0_3, %c0_4, %c0_5] : memref<2x8x64xf32, #tpu.memory_space<vmem>>, vector<2x8x64xf32>
    %c0_6 = arith.constant 0 : index
    %c0_7 = arith.constant 0 : index
    %c0_8 = arith.constant 0 : index
    %6 = vector.load %arg17[%c0_6, %c0_7, %c0_8] : memref<4x2x64xf32, #tpu.memory_space<vmem>>, vector<4x2x64xf32>
    %c0_9 = arith.constant 0 : index
    %c0_10 = arith.constant 0 : index
    %c0_11 = arith.constant 0 : index
    %7 = vector.load %arg18[%c0_9, %c0_10, %c0_11] : memref<4x2x64xf32, #tpu.memory_space<vmem>>, vector<4x2x64xf32>
    %8 = vector.extract_strided_slice %6 {offsets = [3, 0, 0], sizes = [1, 2, 64], strides = [1, 1, 1]} : vector<4x2x64xf32> to vector<1x2x64xf32>
    %9 = vector.shape_cast %8 : vector<1x2x64xf32> to vector<2x64xf32>
    %c0_12 = arith.constant 0 : index
    %c0_13 = arith.constant 0 : index
    %10 = vector.load %arg8[%c0_12, %c0_13] : memref<64x320xf32, #tpu.memory_space<vmem>>, vector<64x320xf32>
    %cst = arith.constant dense<0.000000e+00> : vector<2x320xf32>
    %11 = tpu.matmul %9, %10, %cst {dimension_numbers = #tpu.dot_dimension_numbers<[1], [0], [0], [1], [0, 0, 1, 1], [], []>} : vector<2x64xf32>, vector<64x320xf32>, vector<2x320xf32> -> vector<2x320xf32>
    %12 = vector.extract_strided_slice %11 {offsets = [0, 0], sizes = [2, 256], strides = [1, 1]} : vector<2x320xf32> to vector<2x256xf32>
    %c3 = arith.constant 3 : index
    %c0_14 = arith.constant 0 : index
    %c0_15 = arith.constant 0 : index
    %13 = vector.load %arg12[%c3, %c0_14, %c0_15] : memref<4x1x256xf32, #tpu.memory_space<vmem>>, vector<1x1x256xf32>
    %14 = vector.shape_cast %13 : vector<1x1x256xf32> to vector<1x256xf32>
    %15 = vector.broadcast %14 : vector<1x256xf32> to vector<2x256xf32>
    %16 = arith.addf %12, %15 : vector<2x256xf32>
    %17 = vector.extract_strided_slice %11 {offsets = [0, 256], sizes = [2, 64], strides = [1, 1]} : vector<2x320xf32> to vector<2x64xf32>
    %18 = vector.shape_cast %17 : vector<2x64xf32> to vector<2x1x64xf32>
    %19 = vector.broadcast %18 : vector<2x1x64xf32> to vector<2x8x64xf32>
    %20 = arith.mulf %19, %5 : vector<2x8x64xf32>
    %cst_16 = arith.constant dense<0.000000e+00> : vector<2x8xf32>
    %21 = vector.multi_reduction <add>, %20, %cst_16 [2] : vector<2x8x64xf32> to vector<2x8xf32>
    %c0_17 = arith.constant 0 : index
    %c0_18 = arith.constant 0 : index
    %22 = vector.load %arg3[%c0_17, %c0_18] : memref<2x8xf32, #tpu.memory_space<vmem>>, vector<2x8xf32>
    %23 = arith.addf %21, %22 : vector<2x8xf32>
    %cst_19 = arith.constant dense<0xFF800000> : vector<2xf32>
    %24 = vector.multi_reduction <maximumf>, %23, %cst_19 [1] : vector<2x8xf32> to vector<2xf32>
    %cst_20 = arith.constant 0xFF800000 : f32
    %25 = vector.broadcast %cst_20 : f32 to vector<2xf32>
    %26 = arith.maximumf %25, %24 : vector<2xf32>
    %27 = vector.shape_cast %26 : vector<2xf32> to vector<2x1xf32>
    %28 = vector.broadcast %27 : vector<2x1xf32> to vector<2x8xf32>
    %29 = arith.subf %23, %28 : vector<2x8xf32>
    %30 = math.exp %29 : vector<2x8xf32>
    %cst_21 = arith.constant dense<0.000000e+00> : vector<2xf32>
    %31 = vector.multi_reduction <add>, %30, %cst_21 [1] : vector<2x8xf32> to vector<2xf32>
    %32 = vector.shape_cast %31 : vector<2xf32> to vector<2x1xf32>
    %33 = vector.broadcast %32 : vector<2x1xf32> to vector<2x8xf32>
    %34 = arith.divf %30, %33 : vector<2x8xf32>
    %c0_22 = arith.constant 0 : index
    %c0_23 = arith.constant 0 : index
    %c0_24 = arith.constant 0 : index
    %35 = vector.load %arg16[%c0_22, %c0_23, %c0_24] : memref<1x2x8xf32, #tpu.memory_space<vmem>>, vector<1x2x8xf32>
    %36 = vector.shape_cast %35 : vector<1x2x8xf32> to vector<2x8xf32>
    %37 = vector.shape_cast %34 : vector<2x8xf32> to vector<1x2x8xf32>
    tpu.vector_store %arg16[%c0_22, %c0_23, %c0_24], %37 {strides = array<i32>} : memref<1x2x8xf32, #tpu.memory_space<vmem>>, vector<1x2x8xf32>,
    %38 = vector.shape_cast %34 : vector<2x8xf32> to vector<2x8x1xf32>
    %39 = vector.broadcast %38 : vector<2x8x1xf32> to vector<2x8x64xf32>
    %40 = arith.mulf %39, %5 : vector<2x8x64xf32>
    %cst_25 = arith.constant dense<0.000000e+00> : vector<2x64xf32>
    %41 = vector.multi_reduction <add>, %40, %cst_25 [1] : vector<2x8x64xf32> to vector<2x64xf32>
    %c0_26 = arith.constant 0 : index
    %c0_27 = arith.constant 0 : index
    %42 = vector.load %arg9[%c0_26, %c0_27] : memref<64x192xf32, #tpu.memory_space<vmem>>, vector<64x192xf32>
    %cst_28 = arith.constant dense<0.000000e+00> : vector<2x192xf32>
    %43 = tpu.matmul %41, %42, %cst_28 {dimension_numbers = #tpu.dot_dimension_numbers<[1], [0], [0], [1], [0, 0, 1, 1], [], []>} : vector<2x64xf32>, vector<64x192xf32>, vector<2x192xf32> -> vector<2x192xf32>
    %c0_29 = arith.constant 0 : index
    %c0_30 = arith.constant 0 : index
    %44 = vector.load %arg10[%c0_29, %c0_30] : memref<32x192xf32, #tpu.memory_space<vmem>>, vector<32x192xf32>
    %cst_31 = arith.constant dense<0.000000e+00> : vector<2x192xf32>
    %45 = tpu.matmul %4, %44, %cst_31 {dimension_numbers = #tpu.dot_dimension_numbers<[1], [0], [0], [1], [0, 0, 1, 1], [], []>} : vector<2x32xf32>, vector<32x192xf32>, vector<2x192xf32> -> vector<2x192xf32>
    %46 = vector.extract_strided_slice %43 {offsets = [0, 128], sizes = [2, 64], strides = [1, 1]} : vector<2x192xf32> to vector<2x64xf32>
    %47 = vector.extract_strided_slice %45 {offsets = [0, 128], sizes = [2, 64], strides = [1, 1]} : vector<2x192xf32> to vector<2x64xf32>
    %48 = arith.addf %46, %47 : vector<2x64xf32>
    %c0_32 = arith.constant 0 : index
    %c0_33 = arith.constant 0 : index
    %49 = vector.load %arg13[%c0_32, %c0_33] : memref<1x64xf32, #tpu.memory_space<vmem>>, vector<1x64xf32>
    %50 = vector.broadcast %49 : vector<1x64xf32> to vector<2x64xf32>
    %51 = arith.addf %48, %50 : vector<2x64xf32>
    %52 = vector.extract_strided_slice %43 {offsets = [0, 0], sizes = [2, 128], strides = [1, 1]} : vector<2x192xf32> to vector<2x128xf32>
    %53 = vector.extract_strided_slice %45 {offsets = [0, 0], sizes = [2, 128], strides = [1, 1]} : vector<2x192xf32> to vector<2x128xf32>
    %54 = arith.addf %52, %53 : vector<2x128xf32>
    %c0_34 = arith.constant 0 : index
    %c0_35 = arith.constant 0 : index
    %55 = vector.load %arg14[%c0_34, %c0_35] : memref<1x128xf32, #tpu.memory_space<vmem>>, vector<1x128xf32>
    %56 = vector.broadcast %55 : vector<1x128xf32> to vector<2x128xf32>
    %57 = arith.addf %54, %56 : vector<2x128xf32>
    %58 = vector.extract_strided_slice %6 {offsets = [0, 0, 0], sizes = [1, 2, 64], strides = [1, 1, 1]} : vector<4x2x64xf32> to vector<1x2x64xf32>
    %59 = vector.shape_cast %58 : vector<1x2x64xf32> to vector<2x64xf32>
    %c0_36 = arith.constant 0 : index
    %c0_37 = arith.constant 0 : index
    %c0_38 = arith.constant 0 : index
    %60 = vector.load %arg7[%c0_36, %c0_37, %c0_38] : memref<3x64x256xf32, #tpu.memory_space<vmem>>, vector<1x64x256xf32>
    %61 = vector.shape_cast %60 : vector<1x64x256xf32> to vector<64x256xf32>
    %cst_39 = arith.constant dense<0.000000e+00> : vector<2x256xf32>
    %62 = tpu.matmul %59, %61, %cst_39 {dimension_numbers = #tpu.dot_dimension_numbers<[1], [0], [0], [1], [0, 0, 1, 1], [], []>} : vector<2x64xf32>, vector<64x256xf32>, vector<2x256xf32> -> vector<2x256xf32>
    %c0_40 = arith.constant 0 : index
    %c0_41 = arith.constant 0 : index
    %c0_42 = arith.constant 0 : index
    %63 = vector.load %arg12[%c0_40, %c0_41, %c0_42] : memref<4x1x256xf32, #tpu.memory_space<vmem>>, vector<1x1x256xf32>
    %64 = vector.shape_cast %63 : vector<1x1x256xf32> to vector<1x256xf32>
    %65 = vector.broadcast %64 : vector<1x256xf32> to vector<2x256xf32>
    %66 = arith.addf %62, %65 : vector<2x256xf32>
    %67 = vector.extract_strided_slice %6 {offsets = [1, 0, 0], sizes = [1, 2, 64], strides = [1, 1, 1]} : vector<4x2x64xf32> to vector<1x2x64xf32>
    %68 = vector.shape_cast %67 : vector<1x2x64xf32> to vector<2x64xf32>
    %c1 = arith.constant 1 : index
    %c0_43 = arith.constant 0 : index
    %c0_44 = arith.constant 0 : index
    %69 = vector.load %arg7[%c1, %c0_43, %c0_44] : memref<3x64x256xf32, #tpu.memory_space<vmem>>, vector<1x64x256xf32>
    %70 = vector.shape_cast %69 : vector<1x64x256xf32> to vector<64x256xf32>
    %cst_45 = arith.constant dense<0.000000e+00> : vector<2x256xf32>
    %71 = tpu.matmul %68, %70, %cst_45 {dimension_numbers = #tpu.dot_dimension_numbers<[1], [0], [0], [1], [0, 0, 1, 1], [], []>} : vector<2x64xf32>, vector<64x256xf32>, vector<2x256xf32> -> vector<2x256xf32>
    %c1_46 = arith.constant 1 : index
    %c0_47 = arith.constant 0 : index
    %c0_48 = arith.constant 0 : index
    %72 = vector.load %arg12[%c1_46, %c0_47, %c0_48] : memref<4x1x256xf32, #tpu.memory_space<vmem>>, vector<1x1x256xf32>
    %73 = vector.shape_cast %72 : vector<1x1x256xf32> to vector<1x256xf32>
    %74 = vector.broadcast %73 : vector<1x256xf32> to vector<2x256xf32>
    %75 = arith.addf %71, %74 : vector<2x256xf32>
    %76 = vector.extract_strided_slice %6 {offsets = [2, 0, 0], sizes = [1, 2, 64], strides = [1, 1, 1]} : vector<4x2x64xf32> to vector<1x2x64xf32>
    %77 = vector.shape_cast %76 : vector<1x2x64xf32> to vector<2x64xf32>
    %c2 = arith.constant 2 : index
    %c0_49 = arith.constant 0 : index
    %c0_50 = arith.constant 0 : index
    %78 = vector.load %arg7[%c2, %c0_49, %c0_50] : memref<3x64x256xf32, #tpu.memory_space<vmem>>, vector<1x64x256xf32>
    %79 = vector.shape_cast %78 : vector<1x64x256xf32> to vector<64x256xf32>
    %cst_51 = arith.constant dense<0.000000e+00> : vector<2x256xf32>
    %80 = tpu.matmul %77, %79, %cst_51 {dimension_numbers = #tpu.dot_dimension_numbers<[1], [0], [0], [1], [0, 0, 1, 1], [], []>} : vector<2x64xf32>, vector<64x256xf32>, vector<2x256xf32> -> vector<2x256xf32>
    %c2_52 = arith.constant 2 : index
    %c0_53 = arith.constant 0 : index
    %c0_54 = arith.constant 0 : index
    %81 = vector.load %arg12[%c2_52, %c0_53, %c0_54] : memref<4x1x256xf32, #tpu.memory_space<vmem>>, vector<1x1x256xf32>
    %82 = vector.shape_cast %81 : vector<1x1x256xf32> to vector<1x256xf32>
    %83 = vector.broadcast %82 : vector<1x256xf32> to vector<2x256xf32>
    %84 = arith.addf %80, %83 : vector<2x256xf32>
    %c0_55 = arith.constant 0 : index
    %c0_56 = arith.constant 0 : index
    %c0_57 = arith.constant 0 : index
    %85 = vector.load %arg6[%c0_55, %c0_56, %c0_57] : memref<4x64x256xf32, #tpu.memory_space<vmem>>, vector<1x64x256xf32>
    %86 = vector.shape_cast %85 : vector<1x64x256xf32> to vector<64x256xf32>
    %87 = vector.extract_strided_slice %7 {offsets = [0, 0, 0], sizes = [1, 2, 64], strides = [1, 1, 1]} : vector<4x2x64xf32> to vector<1x2x64xf32>
    %88 = vector.shape_cast %87 : vector<1x2x64xf32> to vector<2x64xf32>
    %cst_58 = arith.constant dense<0.000000e+00> : vector<2x256xf32>
    %89 = tpu.matmul %51, %86, %cst_58 {dimension_numbers = #tpu.dot_dimension_numbers<[1], [0], [0], [1], [0, 0, 1, 1], [], []>} : vector<2x64xf32>, vector<64x256xf32>, vector<2x256xf32> -> vector<2x256xf32>
    %90 = arith.addf %89, %66 : vector<2x256xf32>
    %91 = vector.extract_strided_slice %90 {offsets = [0, 0], sizes = [2, 64], strides = [1, 1]} : vector<2x256xf32> to vector<2x64xf32>
    %92 = arith.negf %91 : vector<2x64xf32>
    %93 = math.exp %92 : vector<2x64xf32>
    %cst_59 = arith.constant 1.000000e+00 : f32
    %94 = vector.broadcast %cst_59 : f32 to vector<2x64xf32>
    %95 = arith.addf %94, %93 : vector<2x64xf32>
    %96 = arith.divf %94, %95 : vector<2x64xf32>
    %97 = vector.extract_strided_slice %90 {offsets = [0, 64], sizes = [2, 64], strides = [1, 1]} : vector<2x256xf32> to vector<2x64xf32>
    %98 = arith.negf %97 : vector<2x64xf32>
    %99 = math.exp %98 : vector<2x64xf32>
    %cst_60 = arith.constant 1.000000e+00 : f32
    %100 = vector.broadcast %cst_60 : f32 to vector<2x64xf32>
    %101 = arith.addf %100, %99 : vector<2x64xf32>
    %102 = arith.divf %100, %101 : vector<2x64xf32>
    %103 = vector.extract_strided_slice %90 {offsets = [0, 128], sizes = [2, 64], strides = [1, 1]} : vector<2x256xf32> to vector<2x64xf32>
    %104 = math.tanh %103 : vector<2x64xf32>
    %105 = vector.extract_strided_slice %90 {offsets = [0, 192], sizes = [2, 64], strides = [1, 1]} : vector<2x256xf32> to vector<2x64xf32>
    %106 = arith.negf %105 : vector<2x64xf32>
    %107 = math.exp %106 : vector<2x64xf32>
    %cst_61 = arith.constant 1.000000e+00 : f32
    %108 = vector.broadcast %cst_61 : f32 to vector<2x64xf32>
    %109 = arith.addf %108, %107 : vector<2x64xf32>
    %110 = arith.divf %108, %109 : vector<2x64xf32>
    %111 = arith.mulf %102, %88 : vector<2x64xf32>
    %112 = arith.mulf %96, %104 : vector<2x64xf32>
    %113 = arith.addf %111, %112 : vector<2x64xf32>
    %114 = math.tanh %113 : vector<2x64xf32>
    %115 = arith.mulf %110, %114 : vector<2x64xf32>
    %c1_62 = arith.constant 1 : index
    %c0_63 = arith.constant 0 : index
    %c0_64 = arith.constant 0 : index
    %116 = vector.load %arg6[%c1_62, %c0_63, %c0_64] : memref<4x64x256xf32, #tpu.memory_space<vmem>>, vector<1x64x256xf32>
    %117 = vector.shape_cast %116 : vector<1x64x256xf32> to vector<64x256xf32>
    %118 = vector.extract_strided_slice %7 {offsets = [1, 0, 0], sizes = [1, 2, 64], strides = [1, 1, 1]} : vector<4x2x64xf32> to vector<1x2x64xf32>
    %119 = vector.shape_cast %118 : vector<1x2x64xf32> to vector<2x64xf32>
    %cst_65 = arith.constant dense<0.000000e+00> : vector<2x256xf32>
    %120 = tpu.matmul %115, %117, %cst_65 {dimension_numbers = #tpu.dot_dimension_numbers<[1], [0], [0], [1], [0, 0, 1, 1], [], []>} : vector<2x64xf32>, vector<64x256xf32>, vector<2x256xf32> -> vector<2x256xf32>
    %121 = arith.addf %120, %75 : vector<2x256xf32>
    %122 = vector.extract_strided_slice %121 {offsets = [0, 0], sizes = [2, 64], strides = [1, 1]} : vector<2x256xf32> to vector<2x64xf32>
    %123 = arith.negf %122 : vector<2x64xf32>
    %124 = math.exp %123 : vector<2x64xf32>
    %cst_66 = arith.constant 1.000000e+00 : f32
    %125 = vector.broadcast %cst_66 : f32 to vector<2x64xf32>
    %126 = arith.addf %125, %124 : vector<2x64xf32>
    %127 = arith.divf %125, %126 : vector<2x64xf32>
    %128 = vector.extract_strided_slice %121 {offsets = [0, 64], sizes = [2, 64], strides = [1, 1]} : vector<2x256xf32> to vector<2x64xf32>
    %129 = arith.negf %128 : vector<2x64xf32>
    %130 = math.exp %129 : vector<2x64xf32>
    %cst_67 = arith.constant 1.000000e+00 : f32
    %131 = vector.broadcast %cst_67 : f32 to vector<2x64xf32>
    %132 = arith.addf %131, %130 : vector<2x64xf32>
    %133 = arith.divf %131, %132 : vector<2x64xf32>
    %134 = vector.extract_strided_slice %121 {offsets = [0, 128], sizes = [2, 64], strides = [1, 1]} : vector<2x256xf32> to vector<2x64xf32>
    %135 = math.tanh %134 : vector<2x64xf32>
    %136 = vector.extract_strided_slice %121 {offsets = [0, 192], sizes = [2, 64], strides = [1, 1]} : vector<2x256xf32> to vector<2x64xf32>
    %137 = arith.negf %136 : vector<2x64xf32>
    %138 = math.exp %137 : vector<2x64xf32>
    %cst_68 = arith.constant 1.000000e+00 : f32
    %139 = vector.broadcast %cst_68 : f32 to vector<2x64xf32>
    %140 = arith.addf %139, %138 : vector<2x64xf32>
    %141 = arith.divf %139, %140 : vector<2x64xf32>
    %142 = arith.mulf %133, %119 : vector<2x64xf32>
    %143 = arith.mulf %127, %135 : vector<2x64xf32>
    %144 = arith.addf %142, %143 : vector<2x64xf32>
    %145 = math.tanh %144 : vector<2x64xf32>
    %146 = arith.mulf %141, %145 : vector<2x64xf32>
    %c2_69 = arith.constant 2 : index
    %c0_70 = arith.constant 0 : index
    %c0_71 = arith.constant 0 : index
    %147 = vector.load %arg6[%c2_69, %c0_70, %c0_71] : memref<4x64x256xf32, #tpu.memory_space<vmem>>, vector<1x64x256xf32>
    %148 = vector.shape_cast %147 : vector<1x64x256xf32> to vector<64x256xf32>
    %149 = vector.extract_strided_slice %7 {offsets = [2, 0, 0], sizes = [1, 2, 64], strides = [1, 1, 1]} : vector<4x2x64xf32> to vector<1x2x64xf32>
    %150 = vector.shape_cast %149 : vector<1x2x64xf32> to vector<2x64xf32>
    %cst_72 = arith.constant dense<0.000000e+00> : vector<2x256xf32>
    %151 = tpu.matmul %146, %148, %cst_72 {dimension_numbers = #tpu.dot_dimension_numbers<[1], [0], [0], [1], [0, 0, 1, 1], [], []>} : vector<2x64xf32>, vector<64x256xf32>, vector<2x256xf32> -> vector<2x256xf32>
    %152 = arith.addf %151, %84 : vector<2x256xf32>
    %153 = vector.extract_strided_slice %152 {offsets = [0, 0], sizes = [2, 64], strides = [1, 1]} : vector<2x256xf32> to vector<2x64xf32>
    %154 = arith.negf %153 : vector<2x64xf32>
    %155 = math.exp %154 : vector<2x64xf32>
    %cst_73 = arith.constant 1.000000e+00 : f32
    %156 = vector.broadcast %cst_73 : f32 to vector<2x64xf32>
    %157 = arith.addf %156, %155 : vector<2x64xf32>
    %158 = arith.divf %156, %157 : vector<2x64xf32>
    %159 = vector.extract_strided_slice %152 {offsets = [0, 64], sizes = [2, 64], strides = [1, 1]} : vector<2x256xf32> to vector<2x64xf32>
    %160 = arith.negf %159 : vector<2x64xf32>
    %161 = math.exp %160 : vector<2x64xf32>
    %cst_74 = arith.constant 1.000000e+00 : f32
    %162 = vector.broadcast %cst_74 : f32 to vector<2x64xf32>
    %163 = arith.addf %162, %161 : vector<2x64xf32>
    %164 = arith.divf %162, %163 : vector<2x64xf32>
    %165 = vector.extract_strided_slice %152 {offsets = [0, 128], sizes = [2, 64], strides = [1, 1]} : vector<2x256xf32> to vector<2x64xf32>
    %166 = math.tanh %165 : vector<2x64xf32>
    %167 = vector.extract_strided_slice %152 {offsets = [0, 192], sizes = [2, 64], strides = [1, 1]} : vector<2x256xf32> to vector<2x64xf32>
    %168 = arith.negf %167 : vector<2x64xf32>
    %169 = math.exp %168 : vector<2x64xf32>
    %cst_75 = arith.constant 1.000000e+00 : f32
    %170 = vector.broadcast %cst_75 : f32 to vector<2x64xf32>
    %171 = arith.addf %170, %169 : vector<2x64xf32>
    %172 = arith.divf %170, %171 : vector<2x64xf32>
    %173 = arith.mulf %164, %150 : vector<2x64xf32>
    %174 = arith.mulf %158, %166 : vector<2x64xf32>
    %175 = arith.addf %173, %174 : vector<2x64xf32>
    %176 = math.tanh %175 : vector<2x64xf32>
    %177 = arith.mulf %172, %176 : vector<2x64xf32>
    %178 = arith.addf %146, %177 : vector<2x64xf32>
    %c3_76 = arith.constant 3 : index
    %c0_77 = arith.constant 0 : index
    %c0_78 = arith.constant 0 : index
    %179 = vector.load %arg6[%c3_76, %c0_77, %c0_78] : memref<4x64x256xf32, #tpu.memory_space<vmem>>, vector<1x64x256xf32>
    %180 = vector.shape_cast %179 : vector<1x64x256xf32> to vector<64x256xf32>
    %181 = vector.extract_strided_slice %7 {offsets = [3, 0, 0], sizes = [1, 2, 64], strides = [1, 1, 1]} : vector<4x2x64xf32> to vector<1x2x64xf32>
    %182 = vector.shape_cast %181 : vector<1x2x64xf32> to vector<2x64xf32>
    %cst_79 = arith.constant dense<0.000000e+00> : vector<2x256xf32>
    %183 = tpu.matmul %178, %180, %cst_79 {dimension_numbers = #tpu.dot_dimension_numbers<[1], [0], [0], [1], [0, 0, 1, 1], [], []>} : vector<2x64xf32>, vector<64x256xf32>, vector<2x256xf32> -> vector<2x256xf32>
    %184 = arith.addf %183, %16 : vector<2x256xf32>
    %185 = vector.extract_strided_slice %184 {offsets = [0, 0], sizes = [2, 64], strides = [1, 1]} : vector<2x256xf32> to vector<2x64xf32>
    %186 = arith.negf %185 : vector<2x64xf32>
    %187 = math.exp %186 : vector<2x64xf32>
    %cst_80 = arith.constant 1.000000e+00 : f32
    %188 = vector.broadcast %cst_80 : f32 to vector<2x64xf32>
    %189 = arith.addf %188, %187 : vector<2x64xf32>
    %190 = arith.divf %188, %189 : vector<2x64xf32>
    %191 = vector.extract_strided_slice %184 {offsets = [0, 64], sizes = [2, 64], strides = [1, 1]} : vector<2x256xf32> to vector<2x64xf32>
    %192 = arith.negf %191 : vector<2x64xf32>
    %193 = math.exp %192 : vector<2x64xf32>
    %cst_81 = arith.constant 1.000000e+00 : f32
    %194 = vector.broadcast %cst_81 : f32 to vector<2x64xf32>
    %195 = arith.addf %194, %193 : vector<2x64xf32>
    %196 = arith.divf %194, %195 : vector<2x64xf32>
    %197 = vector.extract_strided_slice %184 {offsets = [0, 128], sizes = [2, 64], strides = [1, 1]} : vector<2x256xf32> to vector<2x64xf32>
    %198 = math.tanh %197 : vector<2x64xf32>
    %199 = vector.extract_strided_slice %184 {offsets = [0, 192], sizes = [2, 64], strides = [1, 1]} : vector<2x256xf32> to vector<2x64xf32>
    %200 = arith.negf %199 : vector<2x64xf32>
    %201 = math.exp %200 : vector<2x64xf32>
    %cst_82 = arith.constant 1.000000e+00 : f32
    %202 = vector.broadcast %cst_82 : f32 to vector<2x64xf32>
    %203 = arith.addf %202, %201 : vector<2x64xf32>
    %204 = arith.divf %202, %203 : vector<2x64xf32>
    %205 = arith.mulf %196, %182 : vector<2x64xf32>
    %206 = arith.mulf %190, %198 : vector<2x64xf32>
    %207 = arith.addf %205, %206 : vector<2x64xf32>
    %208 = math.tanh %207 : vector<2x64xf32>
    %209 = arith.mulf %204, %208 : vector<2x64xf32>
    %c0_83 = arith.constant 0 : index
    %c0_84 = arith.constant 0 : index
    %210 = vector.load %arg11[%c0_83, %c0_84] : memref<64x128xf32, #tpu.memory_space<vmem>>, vector<64x128xf32>
    %cst_85 = arith.constant dense<0.000000e+00> : vector<2x128xf32>
    %211 = tpu.matmul %209, %210, %cst_85 {dimension_numbers = #tpu.dot_dimension_numbers<[1], [0], [0], [1], [0, 0, 1, 1], [], []>} : vector<2x64xf32>, vector<64x128xf32>, vector<2x128xf32> -> vector<2x128xf32>
    %212 = arith.addf %57, %211 : vector<2x128xf32>
    %cst_86 = arith.constant dense<0xFF800000> : vector<2xf32>
    %213 = vector.multi_reduction <maximumf>, %212, %cst_86 [1] : vector<2x128xf32> to vector<2xf32>
    %cst_87 = arith.constant 0xFF800000 : f32
    %214 = vector.broadcast %cst_87 : f32 to vector<2xf32>
    %215 = arith.maximumf %214, %213 : vector<2xf32>
    %216 = vector.shape_cast %215 : vector<2xf32> to vector<2x1xf32>
    %217 = vector.broadcast %216 : vector<2x1xf32> to vector<2x128xf32>
    %218 = arith.subf %212, %217 : vector<2x128xf32>
    %219 = math.exp %218 : vector<2x128xf32>
    %cst_88 = arith.constant dense<0.000000e+00> : vector<2xf32>
    %220 = vector.multi_reduction <add>, %219, %cst_88 [1] : vector<2x128xf32> to vector<2xf32>
    %221 = vector.shape_cast %220 : vector<2xf32> to vector<2x1xf32>
    %222 = vector.broadcast %221 : vector<2x1xf32> to vector<2x128xf32>
    %223 = arith.divf %219, %222 : vector<2x128xf32>
    %c0_89 = arith.constant 0 : index
    %c0_90 = arith.constant 0 : index
    %c0_91 = arith.constant 0 : index
    %224 = vector.load %arg15[%c0_89, %c0_90, %c0_91] : memref<1x2x128xf32, #tpu.memory_space<vmem>>, vector<1x2x128xf32>
    %225 = vector.shape_cast %224 : vector<1x2x128xf32> to vector<2x128xf32>
    %226 = vector.shape_cast %223 : vector<2x128xf32> to vector<1x2x128xf32>
    tpu.vector_store %arg15[%c0_89, %c0_90, %c0_91], %226 {strides = array<i32>} : memref<1x2x128xf32, #tpu.memory_space<vmem>>, vector<1x2x128xf32>,
    %c0_92 = arith.constant 0 : index
    %c0_93 = arith.constant 0 : index
    %c0_94 = arith.constant 0 : index
    %227 = vector.load %arg17[%c0_92, %c0_93, %c0_94] : memref<4x2x64xf32, #tpu.memory_space<vmem>>, vector<1x2x64xf32>
    %228 = vector.shape_cast %227 : vector<1x2x64xf32> to vector<2x64xf32>
    %229 = vector.shape_cast %115 : vector<2x64xf32> to vector<1x2x64xf32>
    tpu.vector_store %arg17[%c0_92, %c0_93, %c0_94], %229 {strides = array<i32>} : memref<4x2x64xf32, #tpu.memory_space<vmem>>, vector<1x2x64xf32>,
    %c1_95 = arith.constant 1 : index
    %c0_96 = arith.constant 0 : index
    %c0_97 = arith.constant 0 : index
    %230 = vector.load %arg17[%c1_95, %c0_96, %c0_97] : memref<4x2x64xf32, #tpu.memory_space<vmem>>, vector<1x2x64xf32>
    %231 = vector.shape_cast %230 : vector<1x2x64xf32> to vector<2x64xf32>
    %232 = vector.shape_cast %146 : vector<2x64xf32> to vector<1x2x64xf32>
    tpu.vector_store %arg17[%c1_95, %c0_96, %c0_97], %232 {strides = array<i32>} : memref<4x2x64xf32, #tpu.memory_space<vmem>>, vector<1x2x64xf32>,
    %c2_98 = arith.constant 2 : index
    %c0_99 = arith.constant 0 : index
    %c0_100 = arith.constant 0 : index
    %233 = vector.load %arg17[%c2_98, %c0_99, %c0_100] : memref<4x2x64xf32, #tpu.memory_space<vmem>>, vector<1x2x64xf32>
    %234 = vector.shape_cast %233 : vector<1x2x64xf32> to vector<2x64xf32>
    %235 = vector.shape_cast %177 : vector<2x64xf32> to vector<1x2x64xf32>
    tpu.vector_store %arg17[%c2_98, %c0_99, %c0_100], %235 {strides = array<i32>} : memref<4x2x64xf32, #tpu.memory_space<vmem>>, vector<1x2x64xf32>,
    %c3_101 = arith.constant 3 : index
    %c0_102 = arith.constant 0 : index
    %c0_103 = arith.constant 0 : index
    %236 = vector.load %arg17[%c3_101, %c0_102, %c0_103] : memref<4x2x64xf32, #tpu.memory_space<vmem>>, vector<1x2x64xf32>
    %237 = vector.shape_cast %236 : vector<1x2x64xf32> to vector<2x64xf32>
    %238 = vector.shape_cast %209 : vector<2x64xf32> to vector<1x2x64xf32>
    tpu.vector_store %arg17[%c3_101, %c0_102, %c0_103], %238 {strides = array<i32>} : memref<4x2x64xf32, #tpu.memory_space<vmem>>, vector<1x2x64xf32>,
    %c0_104 = arith.constant 0 : index
    %c0_105 = arith.constant 0 : index
    %c0_106 = arith.constant 0 : index
    %239 = vector.load %arg18[%c0_104, %c0_105, %c0_106] : memref<4x2x64xf32, #tpu.memory_space<vmem>>, vector<1x2x64xf32>
    %240 = vector.shape_cast %239 : vector<1x2x64xf32> to vector<2x64xf32>
    %241 = vector.shape_cast %113 : vector<2x64xf32> to vector<1x2x64xf32>
    tpu.vector_store %arg18[%c0_104, %c0_105, %c0_106], %241 {strides = array<i32>} : memref<4x2x64xf32, #tpu.memory_space<vmem>>, vector<1x2x64xf32>,
    %c1_107 = arith.constant 1 : index
    %c0_108 = arith.constant 0 : index
    %c0_109 = arith.constant 0 : index
    %242 = vector.load %arg18[%c1_107, %c0_108, %c0_109] : memref<4x2x64xf32, #tpu.memory_space<vmem>>, vector<1x2x64xf32>
    %243 = vector.shape_cast %242 : vector<1x2x64xf32> to vector<2x64xf32>
    %244 = vector.shape_cast %144 : vector<2x64xf32> to vector<1x2x64xf32>
    tpu.vector_store %arg18[%c1_107, %c0_108, %c0_109], %244 {strides = array<i32>} : memref<4x2x64xf32, #tpu.memory_space<vmem>>, vector<1x2x64xf32>,
    %c2_110 = arith.constant 2 : index
    %c0_111 = arith.constant 0 : index
    %c0_112 = arith.constant 0 : index
    %245 = vector.load %arg18[%c2_110, %c0_111, %c0_112] : memref<4x2x64xf32, #tpu.memory_space<vmem>>, vector<1x2x64xf32>
    %246 = vector.shape_cast %245 : vector<1x2x64xf32> to vector<2x64xf32>
    %247 = vector.shape_cast %175 : vector<2x64xf32> to vector<1x2x64xf32>
    tpu.vector_store %arg18[%c2_110, %c0_111, %c0_112], %247 {strides = array<i32>} : memref<4x2x64xf32, #tpu.memory_space<vmem>>, vector<1x2x64xf32>,
    %c3_113 = arith.constant 3 : index
    %c0_114 = arith.constant 0 : index
    %c0_115 = arith.constant 0 : index
    %248 = vector.load %arg18[%c3_113, %c0_114, %c0_115] : memref<4x2x64xf32, #tpu.memory_space<vmem>>, vector<1x2x64xf32>
    %249 = vector.shape_cast %248 : vector<1x2x64xf32> to vector<2x64xf32>
    %250 = vector.shape_cast %207 : vector<2x64xf32> to vector<1x2x64xf32>
    tpu.vector_store %arg18[%c3_113, %c0_114, %c0_115], %250 {strides = array<i32>} : memref<4x2x64xf32, #tpu.memory_space<vmem>>, vector<1x2x64xf32>,
    return
  }
  func.func @transform_0(%arg0: i32) -> (i32, i32, i32) {
    %c0_i32 = arith.constant 0 : i32
    %c0_i32_0 = arith.constant 0 : i32
    %c0_i32_1 = arith.constant 0 : i32
    return %arg0, %c0_i32, %c0_i32_0 : i32, i32, i32
  }
  func.func @transform_1(%arg0: i32) -> (i32, i32, i32) {
    %c0_i32 = arith.constant 0 : i32
    %c0_i32_0 = arith.constant 0 : i32
    %c0_i32_1 = arith.constant 0 : i32
    %c0_i32_2 = arith.constant 0 : i32
    return %c0_i32, %c0_i32_0, %c0_i32_1 : i32, i32, i32
  }
  func.func @transform_2(%arg0: i32) -> (i32, i32) {
    %c0_i32 = arith.constant 0 : i32
    %c0_i32_0 = arith.constant 0 : i32
    %c0_i32_1 = arith.constant 0 : i32
    return %c0_i32, %c0_i32_0 : i32, i32
  }
  func.func @transform_3(%arg0: i32) -> (i32, i32, i32) {
    %c0_i32 = arith.constant 0 : i32
    %c0_i32_0 = arith.constant 0 : i32
    %c0_i32_1 = arith.constant 0 : i32
    %c0_i32_2 = arith.constant 0 : i32
    return %c0_i32, %c0_i32_0, %c0_i32_1 : i32, i32, i32
  }
  func.func @transform_4(%arg0: i32) -> (i32, i32, i32) {
    %c0_i32 = arith.constant 0 : i32
    %c0_i32_0 = arith.constant 0 : i32
    %c0_i32_1 = arith.constant 0 : i32
    %c0_i32_2 = arith.constant 0 : i32
    return %c0_i32, %c0_i32_0, %c0_i32_1 : i32, i32, i32
  }
  func.func @transform_5(%arg0: i32) -> (i32, i32, i32) {
    %c0_i32 = arith.constant 0 : i32
    %c0_i32_0 = arith.constant 0 : i32
    %c0_i32_1 = arith.constant 0 : i32
    %c0_i32_2 = arith.constant 0 : i32
    return %c0_i32, %c0_i32_0, %c0_i32_1 : i32, i32, i32
  }
  func.func @transform_6(%arg0: i32) -> (i32, i32, i32) {
    %c0_i32 = arith.constant 0 : i32
    %c0_i32_0 = arith.constant 0 : i32
    %c0_i32_1 = arith.constant 0 : i32
    %c0_i32_2 = arith.constant 0 : i32
    return %c0_i32, %c0_i32_0, %c0_i32_1 : i32, i32, i32
  }
  func.func @transform_7(%arg0: i32) -> (i32, i32) {
    %c0_i32 = arith.constant 0 : i32
    %c0_i32_0 = arith.constant 0 : i32
    %c0_i32_1 = arith.constant 0 : i32
    return %c0_i32, %c0_i32_0 : i32, i32
  }
  func.func @transform_8(%arg0: i32) -> (i32, i32) {
    %c0_i32 = arith.constant 0 : i32
    %c0_i32_0 = arith.constant 0 : i32
    %c0_i32_1 = arith.constant 0 : i32
    return %c0_i32, %c0_i32_0 : i32, i32
  }
  func.func @transform_9(%arg0: i32) -> (i32, i32) {
    %c0_i32 = arith.constant 0 : i32
    %c0_i32_0 = arith.constant 0 : i32
    %c0_i32_1 = arith.constant 0 : i32
    return %c0_i32, %c0_i32_0 : i32, i32
  }
  func.func @transform_10(%arg0: i32) -> (i32, i32) {
    %c0_i32 = arith.constant 0 : i32
    %c0_i32_0 = arith.constant 0 : i32
    %c0_i32_1 = arith.constant 0 : i32
    return %c0_i32, %c0_i32_0 : i32, i32
  }
  func.func @transform_11(%arg0: i32) -> (i32, i32, i32) {
    %c0_i32 = arith.constant 0 : i32
    %c0_i32_0 = arith.constant 0 : i32
    %c0_i32_1 = arith.constant 0 : i32
    %c0_i32_2 = arith.constant 0 : i32
    return %c0_i32, %c0_i32_0, %c0_i32_1 : i32, i32, i32
  }
  func.func @transform_12(%arg0: i32) -> (i32, i32) {
    %c0_i32 = arith.constant 0 : i32
    %c0_i32_0 = arith.constant 0 : i32
    %c0_i32_1 = arith.constant 0 : i32
    return %c0_i32, %c0_i32_0 : i32, i32
  }
  func.func @transform_13(%arg0: i32) -> (i32, i32) {
    %c0_i32 = arith.constant 0 : i32
    %c0_i32_0 = arith.constant 0 : i32
    %c0_i32_1 = arith.constant 0 : i32
    return %c0_i32, %c0_i32_0 : i32, i32
  }
  func.func @transform_14(%arg0: i32) -> (i32, i32, i32) {
    %c0_i32 = arith.constant 0 : i32
    %c0_i32_0 = arith.constant 0 : i32
    %c0_i32_1 = arith.constant 0 : i32
    return %arg0, %c0_i32, %c0_i32_0 : i32, i32, i32
  }
  func.func @transform_15(%arg0: i32) -> (i32, i32, i32) {
    %c0_i32 = arith.constant 0 : i32
    %c0_i32_0 = arith.constant 0 : i32
    %c0_i32_1 = arith.constant 0 : i32
    return %arg0, %c0_i32, %c0_i32_0 : i32, i32, i32
  }
  func.func @transform_16(%arg0: i32) -> (i32, i32, i32) {
    %c0_i32 = arith.constant 0 : i32
    %c0_i32_0 = arith.constant 0 : i32
    %c0_i32_1 = arith.constant 0 : i32
    %c0_i32_2 = arith.constant 0 : i32
    return %c0_i32, %c0_i32_0, %c0_i32_1 : i32, i32, i32
  }
  func.func @transform_17(%arg0: i32) -> (i32, i32, i32) {
    %c0_i32 = arith.constant 0 : i32
    %c0_i32_0 = arith.constant 0 : i32
    %c0_i32_1 = arith.constant 0 : i32
    %c0_i32_2 = arith.constant 0 : i32
    return %c0_i32, %c0_i32_0, %c0_i32_1 : i32, i32, i32
  }
}

</mosaic_0001>

<llo_original>
// kernel: tpu_custom_call.1
$region0: #{tpu_custom_call.1}
  #allocation0 [shape = 'u32[]', space=smem, size = 0x4, offset = 0x4, fixed_abs, tag = 'smem constant byte address 0x4 - core index']
  #allocation1 [shape = 'u32[72,128]{1,0:T(1,128)}', space=vmem, size = 0x9000, scoped, tag = 'internal scratch']
  %s0 = inlined_call_operand.hbm [shape: f32[6,2,32], index: 0, kind: input, shape index: {}]
  %s1 = inlined_call_operand.hbm [shape: f32[2,8,64], index: 1, kind: input, shape index: {}]
  %s2 = inlined_call_operand.hbm [shape: f32[2,8], index: 2, kind: input, shape index: {}]
  %s3 = inlined_call_operand.hbm [shape: f32[4,2,64], index: 3, kind: input, shape index: {}]
  %s4 = inlined_call_operand.hbm [shape: f32[4,2,64], index: 4, kind: input, shape index: {}]
  %s5 = inlined_call_operand.hbm [shape: f32[4,64,256], index: 5, kind: input, shape index: {}]
  %s6 = inlined_call_operand.hbm [shape: f32[3,64,256], index: 6, kind: input, shape index: {}]
  %s7 = inlined_call_operand.hbm [shape: f32[64,320], index: 7, kind: input, shape index: {}]
  %s8 = inlined_call_operand.hbm [shape: f32[64,192], index: 8, kind: input, shape index: {}]
  %s9 = inlined_call_operand.hbm [shape: f32[32,192], index: 9, kind: input, shape index: {}]
  %s10 = inlined_call_operand.hbm [shape: f32[64,128], index: 10, kind: input, shape index: {}]
  %s11 = inlined_call_operand.vmem [shape: f32[4,1,256], index: 11, kind: input, shape index: {}]
  %s12 = inlined_call_operand.vmem [shape: f32[1,64], index: 12, kind: input, shape index: {}]
  %s13 = inlined_call_operand.vmem [shape: f32[1,128], index: 13, kind: input, shape index: {}]
  %s14 = inlined_call_operand.hbm [shape: f32[6,2,128], index: 14, kind: output, shape index: {0}]
  %s15 = inlined_call_operand.hbm [shape: f32[6,2,8], index: 15, kind: output, shape index: {1}]
  %s16 = inlined_call_operand.hbm [shape: f32[4,2,64], index: 16, kind: output, shape index: {2}]
  %s17 = inlined_call_operand.hbm [shape: f32[4,2,64], index: 17, kind: output, shape index: {3}]
  %18 = xla_tuple %s14, %s15, %s16, %s17
  %s19 = sld [smem:[#allocation0]]
  $region161: #{tpu_custom_call.1} parent=0
    _
  %s21 = ssub.s32 1, %s19
  %s22 = scalar_select 0, %s21, %s19
  $region1: #{tpu_custom_call.1} parent=0
    #allocation2 [shape = 'u8[2048]{0}', space=vmem, size = 0x800, scoped, tag = 'input window, operand 0']
    #allocation3 [shape = 's32[2]{0}', space=sflag, size = 0x8, scoped, tag = 'scoped memory for tpu_custom_call.1']
    #allocation4 [shape = 's32[2]{0}', space=sflag, size = 0x8, scoped, tag = 'scoped memory for tpu_custom_call.1']
    #allocation5 [shape = 'u8[8192]{0}', space=vmem, size = 0x2000, scoped, tag = 'input window, operand 1, single buffered']
    #allocation6 [shape = 's32[1]{0}', space=sflag, size = 0x4, scoped, tag = 'scoped memory for tpu_custom_call.1']
    #allocation7 [shape = 'u8[1024]{0}', space=vmem, size = 0x400, scoped, tag = 'input window, operand 2, single buffered']
    #allocation8 [shape = 'u8[4096]{0}', space=vmem, size = 0x1000, scoped, tag = 'input window, operand 3, single buffered']
    #allocation9 [shape = 's32[1]{0}', space=sflag, size = 0x4, scoped, tag = 'scoped memory for tpu_custom_call.1']
    #allocation10 [shape = 'u8[4096]{0}', space=vmem, size = 0x1000, scoped, tag = 'input window, operand 4, single buffered']
    #allocation11 [shape = 'u8[262144]{0}', space=vmem, size = 0x40000, scoped, tag = 'input window, operand 5, single buffered']
    #allocation12 [shape = 's32[1]{0}', space=sflag, size = 0x4, scoped, tag = 'scoped memory for tpu_custom_call.1']
    #allocation13 [shape = 'u8[196608]{0}', space=vmem, size = 0x30000, scoped, tag = 'input window, operand 6, single buffered']
    #allocation14 [shape = 'u8[98304]{0}', space=vmem, size = 0x18000, scoped, tag = 'input window, operand 7, single buffered']
    #allocation15 [shape = 's32[1]{0}', space=sflag, size = 0x4, scoped, tag = 'scoped memory for tpu_custom_call.1']
    #allocation16 [shape = 'u8[65536]{0}', space=vmem, size = 0x10000, scoped, tag = 'input window, operand 8, single buffered']
    #allocation17 [shape = 'u8[32768]{0}', space=vmem, size = 0x8000, scoped, tag = 'input window, operand 9, single buffered']
    #allocation18 [shape = 's32[1]{0}', space=sflag, size = 0x4, scoped, tag = 'scoped memory for tpu_custom_call.1']
    #allocation19 [shape = 'u8[32768]{0}', space=vmem, size = 0x8000, scoped, tag = 'input window, operand 10, single buffered']
    #allocation20 [shape = 'u8[2048]{0}', space=vmem, size = 0x800, scoped, tag = 'output window, operand 0']
    #allocation21 [shape = 'u8[2048]{0}', space=vmem, size = 0x800, scoped, tag = 'output window, operand 1']
    #allocation22 [shape = 's32[2]{0}', space=sflag, size = 0x8, scoped, tag = 'scoped memory for tpu_custom_call.1']
    #allocation23 [shape = 'u8[4096]{0}', space=vmem, size = 0x1000, scoped, tag = 'output window, operand 2, single buffered']
    #allocation24 [shape = 'u8[4096]{0}', space=vmem, size = 0x1000, scoped, tag = 'output window, operand 3, single buffered']
    #allocation25 [shape = 's32[1]{0}', space=sflag, size = 0x4, scoped, tag = 'scoped memory for tpu_custom_call.1']
    %23 = vsyncpa [#allocation3], 0
    %s24 = scalar_lea.sflag [#allocation3], 1
    %25 = vsyncpa %s24, 0
    %26 = vsyncpa [#allocation6], 0
    %27 = vsyncpa [#allocation9], 0
    %28 = vsyncpa [#allocation12], 0
    %29 = vsyncpa [#allocation15], 0
    %30 = vsyncpa [#allocation18], 0
    %31 = vsyncpa [#allocation4], 0
    %s32 = scalar_lea.sflag [#allocation4], 1
    %33 = vsyncpa %s32, 0
    %34 = vsyncpa [#allocation22], 0
    %s35 = scalar_lea.sflag [#allocation22], 1
    %36 = vsyncpa %s35, 0
    %37 = vsyncpa [#allocation25], 0
    loop: start=0, step=1, limit=8
    $region2: #{tpu_custom_call.1} parent=1 // loop_pre_header
      _
    $region3: #{tpu_custom_call.1} parent=1 // loop_header
      %s39 = sphi 0, %s43
      %p40 = scmp.ge.s32.totalorder %s39, 8
      %s49 = sphi 0, %s51
      %s52 = sphi 0, %s49
      %s53 = sphi 0, %s52
      %s69 = sphi 0, %s53
      %s73 = sphi 0, %s73
      %s75 = sphi 0, %s73
      %s76 = sphi 0, %s75
      %s90 = sphi 0, %s76
      %s94 = sphi 0, %s94
      %s96 = sphi 0, %s94
      %s97 = sphi 0, %s96
      %s111 = sphi 0, %s97
      %s115 = sphi 0, %s115
      %s117 = sphi 0, %s115
      %s118 = sphi 0, %s117
      %s132 = sphi 0, %s118
      %s136 = sphi 0, %s136
      %s138 = sphi 0, %s136
      %s139 = sphi 0, %s138
      %s153 = sphi 0, %s139
      %s157 = sphi 0, %s157
      %s159 = sphi 0, %s157
      %s160 = sphi 0, %s159
      %s174 = sphi 0, %s160
      %s178 = sphi 0, %s178
      %s180 = sphi 0, %s178
      %s181 = sphi 0, %s180
      %s195 = sphi 0, %s181
      %s199 = sphi 0, %s199
      %s201 = sphi 0, %s199
      %s202 = sphi 0, %s201
      %s216 = sphi 0, %s202
      %s220 = sphi 0, %s220
      %s222 = sphi 0, %s220
      %s223 = sphi 0, %s222
      %s237 = sphi 0, %s223
      %s241 = sphi 0, %s241
      %s243 = sphi 0, %s241
      %s244 = sphi 0, %s243
      %s258 = sphi 0, %s244
      %s262 = sphi 0, %s262
      %s264 = sphi 0, %s262
      %s265 = sphi 0, %s264
      %s279 = sphi 0, %s265
      %s283 = sphi 0, %s283
      %s285 = sphi 0, %s283
      %s286 = sphi 0, %s285
      %s300 = sphi 0, %s286
      %s304 = sphi 0, %s304
      %s306 = sphi 0, %s304
      %s307 = sphi 0, %s306
      %s321 = sphi 0, %s307
      %s325 = sphi 0, %s325
      %s327 = sphi 0, %s325
      %s328 = sphi 0, %s327
      %s342 = sphi 0, %s328
      %s348 = sphi 0, %s350
      %s351 = sphi 0, %s348
      %s352 = sphi 0, %s351
      %s368 = sphi 0, %s352
      %s374 = sphi 0, %s376
      %s377 = sphi 0, %s374
      %s378 = sphi 0, %s377
      %s394 = sphi 0, %s378
      %s398 = sphi 0, %s398
      %s400 = sphi 0, %s398
      %s401 = sphi 0, %s400
      %s415 = sphi 0, %s401
      %s419 = sphi 0, %s419
      %s421 = sphi 0, %s419
      %s422 = sphi 0, %s421
      %s436 = sphi 0, %s422
    $region4: #{tpu_custom_call.1} parent=1 // loop_header_branch
      %42 = sbr.rel (%p40) target = $region8
    $region5: #{tpu_custom_call.1} parent=1 // loop_body
      %s44 = ssub.s32 %s39, 1
      %s45 = ssub.s32 %s39, 2
      %s46 = sadd.s32 %s39, 1
      %s47 = ssub.s32 %s39, %s46
      %p48 = scmp.eq.s32.totalorder %s47, 0
      %s50 = sadd.s32 %s49, 1
      %s51 = scalar_select %p48, %s49, %s50
      %p54 = pneg %p48
      %p55 = scmp.eq.s32.totalorder %s39, 5
      %p56 = por %p54, %p55
      %p57 = scmp.ne.s32.totalorder %s49, %s52
      %p58 = scmp.eq.s32.totalorder %s39, 0
      %p59 = por %p57, %p58
      %p60 = scmp.ne.s32.totalorder %s49, %s52
      %p61 = scmp.eq.s32.totalorder %s44, 5
      %p62 = por %p60, %p61
      %p63 = scmp.ne.s32.totalorder %s52, %s53
      %p64 = scmp.eq.s32.totalorder %s44, 0
      %p65 = por %p63, %p64
      %p66 = scmp.ne.s32.totalorder %s52, %s53
      %p67 = scmp.eq.s32.totalorder %s45, 5
      %p68 = por %p66, %p67
      %p70 = scmp.ne.s32.totalorder %s53, %s69
      %p71 = scmp.eq.s32.totalorder %s45, 0
      %p72 = por %p70, %p71
      %s74 = sadd.s32 %s73, 1
      %p77 = scmp.eq.s32.totalorder %s39, 5
      %p78 = scmp.ne.s32.totalorder %s73, %s75
      %p79 = scmp.eq.s32.totalorder %s39, 0
      %p80 = por %p78, %p79
      %p81 = scmp.ne.s32.totalorder %s73, %s75
      %p82 = scmp.eq.s32.totalorder %s44, 5
      %p83 = por %p81, %p82
      %p84 = scmp.ne.s32.totalorder %s75, %s76
      %p85 = scmp.eq.s32.totalorder %s44, 0
      %p86 = por %p84, %p85
      %p87 = scmp.ne.s32.totalorder %s75, %s76
      %p88 = scmp.eq.s32.totalorder %s45, 5
      %p89 = por %p87, %p88
      %p91 = scmp.ne.s32.totalorder %s76, %s90
      %p92 = scmp.eq.s32.totalorder %s45, 0
      %p93 = por %p91, %p92
      %s95 = sadd.s32 %s94, 1
      %p98 = scmp.eq.s32.totalorder %s39, 5
      %p99 = scmp.ne.s32.totalorder %s94, %s96
      %p100 = scmp.eq.s32.totalorder %s39, 0
      %p101 = por %p99, %p100
      %p102 = scmp.ne.s32.totalorder %s94, %s96
      %p103 = scmp.eq.s32.totalorder %s44, 5
      %p104 = por %p102, %p103
      %p105 = scmp.ne.s32.totalorder %s96, %s97
      %p106 = scmp.eq.s32.totalorder %s44, 0
      %p107 = por %p105, %p106
      %p108 = scmp.ne.s32.totalorder %s96, %s97
      %p109 = scmp.eq.s32.totalorder %s45, 5
      %p110 = por %p108, %p109
      %p112 = scmp.ne.s32.totalorder %s97, %s111
      %p113 = scmp.eq.s32.totalorder %s45, 0
      %p114 = por %p112, %p113
      %s116 = sadd.s32 %s115, 1
      %p119 = scmp.eq.s32.totalorder %s39, 5
      %p120 = scmp.ne.s32.totalorder %s115, %s117
      %p121 = scmp.eq.s32.totalorder %s39, 0
      %p122 = por %p120, %p121
      %p123 = scmp.ne.s32.totalorder %s115, %s117
      %p124 = scmp.eq.s32.totalorder %s44, 5
      %p125 = por %p123, %p124
      %p126 = scmp.ne.s32.totalorder %s117, %s118
      %p127 = scmp.eq.s32.totalorder %s44, 0
      %p128 = por %p126, %p127
      %p129 = scmp.ne.s32.totalorder %s117, %s118
      %p130 = scmp.eq.s32.totalorder %s45, 5
      %p131 = por %p129, %p130
      %p133 = scmp.ne.s32.totalorder %s118, %s132
      %p134 = scmp.eq.s32.totalorder %s45, 0
      %p135 = por %p133, %p134
      %s137 = sadd.s32 %s136, 1
      %p140 = scmp.eq.s32.totalorder %s39, 5
      %p141 = scmp.ne.s32.totalorder %s136, %s138
      %p142 = scmp.eq.s32.totalorder %s39, 0
      %p143 = por %p141, %p142
      %p144 = scmp.ne.s32.totalorder %s136, %s138
      %p145 = scmp.eq.s32.totalorder %s44, 5
      %p146 = por %p144, %p145
      %p147 = scmp.ne.s32.totalorder %s138, %s139
      %p148 = scmp.eq.s32.totalorder %s44, 0
      %p149 = por %p147, %p148
      %p150 = scmp.ne.s32.totalorder %s138, %s139
      %p151 = scmp.eq.s32.totalorder %s45, 5
      %p152 = por %p150, %p151
      %p154 = scmp.ne.s32.totalorder %s139, %s153
      %p155 = scmp.eq.s32.totalorder %s45, 0
      %p156 = por %p154, %p155
      %s158 = sadd.s32 %s157, 1
      %p161 = scmp.eq.s32.totalorder %s39, 5
      %p162 = scmp.ne.s32.totalorder %s157, %s159
      %p163 = scmp.eq.s32.totalorder %s39, 0
      %p164 = por %p162, %p163
      %p165 = scmp.ne.s32.totalorder %s157, %s159
      %p166 = scmp.eq.s32.totalorder %s44, 5
      %p167 = por %p165, %p166
      %p168 = scmp.ne.s32.totalorder %s159, %s160
      %p169 = scmp.eq.s32.totalorder %s44, 0
      %p170 = por %p168, %p169
      %p171 = scmp.ne.s32.totalorder %s159, %s160
      %p172 = scmp.eq.s32.totalorder %s45, 5
      %p173 = por %p171, %p172
      %p175 = scmp.ne.s32.totalorder %s160, %s174
      %p176 = scmp.eq.s32.totalorder %s45, 0
      %p177 = por %p175, %p176
      %s179 = sadd.s32 %s178, 1
      %p182 = scmp.eq.s32.totalorder %s39, 5
      %p183 = scmp.ne.s32.totalorder %s178, %s180
      %p184 = scmp.eq.s32.totalorder %s39, 0
      %p185 = por %p183, %p184
      %p186 = scmp.ne.s32.totalorder %s178, %s180
      %p187 = scmp.eq.s32.totalorder %s44, 5
      %p188 = por %p186, %p187
      %p189 = scmp.ne.s32.totalorder %s180, %s181
      %p190 = scmp.eq.s32.totalorder %s44, 0
      %p191 = por %p189, %p190
      %p192 = scmp.ne.s32.totalorder %s180, %s181
      %p193 = scmp.eq.s32.totalorder %s45, 5
      %p194 = por %p192, %p193
      %p196 = scmp.ne.s32.totalorder %s181, %s195
      %p197 = scmp.eq.s32.totalorder %s45, 0
      %p198 = por %p196, %p197
      %s200 = sadd.s32 %s199, 1
      %p203 = scmp.eq.s32.totalorder %s39, 5
      %p204 = scmp.ne.s32.totalorder %s199, %s201
      %p205 = scmp.eq.s32.totalorder %s39, 0
      %p206 = por %p204, %p205
      %p207 = scmp.ne.s32.totalorder %s199, %s201
      %p208 = scmp.eq.s32.totalorder %s44, 5
      %p209 = por %p207, %p208
      %p210 = scmp.ne.s32.totalorder %s201, %s202
      %p211 = scmp.eq.s32.totalorder %s44, 0
      %p212 = por %p210, %p211
      %p213 = scmp.ne.s32.totalorder %s201, %s202
      %p214 = scmp.eq.s32.totalorder %s45, 5
      %p215 = por %p213, %p214
      %p217 = scmp.ne.s32.totalorder %s202, %s216
      %p218 = scmp.eq.s32.totalorder %s45, 0
      %p219 = por %p217, %p218
      %s221 = sadd.s32 %s220, 1
      %p224 = scmp.eq.s32.totalorder %s39, 5
      %p225 = scmp.ne.s32.totalorder %s220, %s222
      %p226 = scmp.eq.s32.totalorder %s39, 0
      %p227 = por %p225, %p226
      %p228 = scmp.ne.s32.totalorder %s220, %s222
      %p229 = scmp.eq.s32.totalorder %s44, 5
      %p230 = por %p228, %p229
      %p231 = scmp.ne.s32.totalorder %s222, %s223
      %p232 = scmp.eq.s32.totalorder %s44, 0
      %p233 = por %p231, %p232
      %p234 = scmp.ne.s32.totalorder %s222, %s223
      %p235 = scmp.eq.s32.totalorder %s45, 5
      %p236 = por %p234, %p235
      %p238 = scmp.ne.s32.totalorder %s223, %s237
      %p239 = scmp.eq.s32.totalorder %s45, 0
      %p240 = por %p238, %p239
      %s242 = sadd.s32 %s241, 1
      %p245 = scmp.eq.s32.totalorder %s39, 5
      %p246 = scmp.ne.s32.totalorder %s241, %s243
      %p247 = scmp.eq.s32.totalorder %s39, 0
      %p248 = por %p246, %p247
      %p249 = scmp.ne.s32.totalorder %s241, %s243
      %p250 = scmp.eq.s32.totalorder %s44, 5
      %p251 = por %p249, %p250
      %p252 = scmp.ne.s32.totalorder %s243, %s244
      %p253 = scmp.eq.s32.totalorder %s44, 0
      %p254 = por %p252, %p253
      %p255 = scmp.ne.s32.totalorder %s243, %s244
      %p256 = scmp.eq.s32.totalorder %s45, 5
      %p257 = por %p255, %p256
      %p259 = scmp.ne.s32.totalorder %s244, %s258
      %p260 = scmp.eq.s32.totalorder %s45, 0
      %p261 = por %p259, %p260
      %s263 = sadd.s32 %s262, 1
      %p266 = scmp.eq.s32.totalorder %s39, 5
      %p267 = scmp.ne.s32.totalorder %s262, %s264
      %p268 = scmp.eq.s32.totalorder %s39, 0
      %p269 = por %p267, %p268
      %p270 = scmp.ne.s32.totalorder %s262, %s264
      %p271 = scmp.eq.s32.totalorder %s44, 5
      %p272 = por %p270, %p271
      %p273 = scmp.ne.s32.totalorder %s264, %s265
      %p274 = scmp.eq.s32.totalorder %s44, 0
      %p275 = por %p273, %p274
      %p276 = scmp.ne.s32.totalorder %s264, %s265
      %p277 = scmp.eq.s32.totalorder %s45, 5
      %p278 = por %p276, %p277
      %p280 = scmp.ne.s32.totalorder %s265, %s279
      %p281 = scmp.eq.s32.totalorder %s45, 0
      %p282 = por %p280, %p281
      %s284 = sadd.s32 %s283, 1
      %p287 = scmp.eq.s32.totalorder %s39, 5
      %p288 = scmp.ne.s32.totalorder %s283, %s285
      %p289 = scmp.eq.s32.totalorder %s39, 0
      %p290 = por %p288, %p289
      %p291 = scmp.ne.s32.totalorder %s283, %s285
      %p292 = scmp.eq.s32.totalorder %s44, 5
      %p293 = por %p291, %p292
      %p294 = scmp.ne.s32.totalorder %s285, %s286
      %p295 = scmp.eq.s32.totalorder %s44, 0
      %p296 = por %p294, %p295
      %p297 = scmp.ne.s32.totalorder %s285, %s286
      %p298 = scmp.eq.s32.totalorder %s45, 5
      %p299 = por %p297, %p298
      %p301 = scmp.ne.s32.totalorder %s286, %s300
      %p302 = scmp.eq.s32.totalorder %s45, 0
      %p303 = por %p301, %p302
      %s305 = sadd.s32 %s304, 1
      %p308 = scmp.eq.s32.totalorder %s39, 5
      %p309 = scmp.ne.s32.totalorder %s304, %s306
      %p310 = scmp.eq.s32.totalorder %s39, 0
      %p311 = por %p309, %p310
      %p312 = scmp.ne.s32.totalorder %s304, %s306
      %p313 = scmp.eq.s32.totalorder %s44, 5
      %p314 = por %p312, %p313
      %p315 = scmp.ne.s32.totalorder %s306, %s307
      %p316 = scmp.eq.s32.totalorder %s44, 0
      %p317 = por %p315, %p316
      %p318 = scmp.ne.s32.totalorder %s306, %s307
      %p319 = scmp.eq.s32.totalorder %s45, 5
      %p320 = por %p318, %p319
      %p322 = scmp.ne.s32.totalorder %s307, %s321
      %p323 = scmp.eq.s32.totalorder %s45, 0
      %p324 = por %p322, %p323
      %s326 = sadd.s32 %s325, 1
      %p329 = scmp.eq.s32.totalorder %s39, 5
      %p330 = scmp.ne.s32.totalorder %s325, %s327
      %p331 = scmp.eq.s32.totalorder %s39, 0
      %p332 = por %p330, %p331
      %p333 = scmp.ne.s32.totalorder %s325, %s327
      %p334 = scmp.eq.s32.totalorder %s44, 5
      %p335 = por %p333, %p334
      %p336 = scmp.ne.s32.totalorder %s327, %s328
      %p337 = scmp.eq.s32.totalorder %s44, 0
      %p338 = por %p336, %p337
      %p339 = scmp.ne.s32.totalorder %s327, %s328
      %p340 = scmp.eq.s32.totalorder %s45, 5
      %p341 = por %p339, %p340
      %p343 = scmp.ne.s32.totalorder %s328, %s342
      %p344 = scmp.eq.s32.totalorder %s45, 0
      %p345 = por %p343, %p344
      %s346 = ssub.s32 %s39, %s46
      %p347 = scmp.eq.s32.totalorder %s346, 0
      %s349 = sadd.s32 %s348, 1
      %s350 = scalar_select %p347, %s348, %s349
      %p353 = pneg %p347
      %p354 = scmp.eq.s32.totalorder %s39, 5
      %p355 = por %p353, %p354
      %p356 = scmp.ne.s32.totalorder %s348, %s351
      %p357 = scmp.eq.s32.totalorder %s39, 0
      %p358 = por %p356, %p357
      %p359 = scmp.ne.s32.totalorder %s348, %s351
      %p360 = scmp.eq.s32.totalorder %s44, 5
      %p361 = por %p359, %p360
      %p362 = scmp.ne.s32.totalorder %s351, %s352
      %p363 = scmp.eq.s32.totalorder %s44, 0
      %p364 = por %p362, %p363
      %p365 = scmp.ne.s32.totalorder %s351, %s352
      %p366 = scmp.eq.s32.totalorder %s45, 5
      %p367 = por %p365, %p366
      %p369 = scmp.ne.s32.totalorder %s352, %s368
      %p370 = scmp.eq.s32.totalorder %s45, 0
      %p371 = por %p369, %p370
      %s372 = ssub.s32 %s39, %s46
      %p373 = scmp.eq.s32.totalorder %s372, 0
      %s375 = sadd.s32 %s374, 1
      %s376 = scalar_select %p373, %s374, %s375
      %p379 = pneg %p373
      %p380 = scmp.eq.s32.totalorder %s39, 5
      %p381 = por %p379, %p380
      %p382 = scmp.ne.s32.totalorder %s374, %s377
      %p383 = scmp.eq.s32.totalorder %s39, 0
      %p384 = por %p382, %p383
      %p385 = scmp.ne.s32.totalorder %s374, %s377
      %p386 = scmp.eq.s32.totalorder %s44, 5
      %p387 = por %p385, %p386
      %p388 = scmp.ne.s32.totalorder %s377, %s378
      %p389 = scmp.eq.s32.totalorder %s44, 0
      %p390 = por %p388, %p389
      %p391 = scmp.ne.s32.totalorder %s377, %s378
      %p392 = scmp.eq.s32.totalorder %s45, 5
      %p393 = por %p391, %p392
      %p395 = scmp.ne.s32.totalorder %s378, %s394
      %p396 = scmp.eq.s32.totalorder %s45, 0
      %p397 = por %p395, %p396
      %s399 = sadd.s32 %s398, 1
      %p402 = scmp.eq.s32.totalorder %s39, 5
      %p403 = scmp.ne.s32.totalorder %s398, %s400
      %p404 = scmp.eq.s32.totalorder %s39, 0
      %p405 = por %p403, %p404
      %p406 = scmp.ne.s32.totalorder %s398, %s400
      %p407 = scmp.eq.s32.totalorder %s44, 5
      %p408 = por %p406, %p407
      %p409 = scmp.ne.s32.totalorder %s400, %s401
      %p410 = scmp.eq.s32.totalorder %s44, 0
      %p411 = por %p409, %p410
      %p412 = scmp.ne.s32.totalorder %s400, %s401
      %p413 = scmp.eq.s32.totalorder %s45, 5
      %p414 = por %p412, %p413
      %p416 = scmp.ne.s32.totalorder %s401, %s415
      %p417 = scmp.eq.s32.totalorder %s45, 0
      %p418 = por %p416, %p417
      %s420 = sadd.s32 %s419, 1
      %p423 = scmp.eq.s32.totalorder %s39, 5
      %p424 = scmp.ne.s32.totalorder %s419, %s421
      %p425 = scmp.eq.s32.totalorder %s39, 0
      %p426 = por %p424, %p425
      %p427 = scmp.ne.s32.totalorder %s419, %s421
      %p428 = scmp.eq.s32.totalorder %s44, 5
      %p429 = por %p427, %p428
      %p430 = scmp.ne.s32.totalorder %s421, %s422
      %p431 = scmp.eq.s32.totalorder %s44, 0
      %p432 = por %p430, %p431
      %p433 = scmp.ne.s32.totalorder %s421, %s422
      %p434 = scmp.eq.s32.totalorder %s45, 5
      %p435 = por %p433, %p434
      %p437 = scmp.ne.s32.totalorder %s422, %s436
      %p438 = scmp.eq.s32.totalorder %s45, 0
      %p439 = por %p437, %p438
      %p440 = scmp.le.s32.totalorder 1, %s39
      %p441 = scmp.lt.s32.totalorder %s39, 7
      %p442 = pnand %p440, %p441
      %p443 = pneg %p442
      // Predicated region
      $region9: #{tpu_custom_call.1} parent=5 // pred_check
        _
      $region10: #{tpu_custom_call.1} parent=5 // pred_check_branch
        %445 = sbr.rel (%p442) target = $region12
      $region11: #{tpu_custom_call.1} parent=5 // pred_region
        %s446 = ssub.s32 %s39, 1
        // Predicated region
        $region13: #{tpu_custom_call.1} parent=11 // pred_check
          %p447 = pneg %p86
        $region14: #{tpu_custom_call.1} parent=11 // pred_check_branch
          %449 = sbr.rel (%p447) target = $region16
        $region15: #{tpu_custom_call.1} parent=11 // pred_region
          %451 = vsyncadd [#allocation6], 0
          %s452 = sshll.u32 %s1, 4
          %s453 = int_to_ptr.hbm [resolvable:$true] %s452
          %s454 = sshll.u32 [#allocation5], 4
          %s455 = int_to_ptr.vmem [resolvable:$true] %s454
          %460 = dma.hbm_to_vmem [thread:$0]  %s453, 256, %s455, [#allocation6], 128, 128, 8
        $region16: #{tpu_custom_call.1} parent=11 // pred_fallthru
          _
        // Predicated region
        $region17: #{tpu_custom_call.1} parent=11 // pred_check
          %p461 = pneg %p107
        $region18: #{tpu_custom_call.1} parent=11 // pred_check_branch
          %463 = sbr.rel (%p461) target = $region20
        $region19: #{tpu_custom_call.1} parent=11 // pred_region
          %465 = vsyncadd [#allocation6], 0
          %s467 = sshll.u32 %s2, 4
          %s468 = int_to_ptr.hbm [resolvable:$true] %s467
          %s469 = sshll.u32 [#allocation7], 4
          %s470 = int_to_ptr.vmem [resolvable:$true] %s469
          %472 = dma.hbm_to_vmem [thread:$0]  %s468, 32, %s470, [#allocation6]
        $region20: #{tpu_custom_call.1} parent=11 // pred_fallthru
          _
        // Predicated region
        $region21: #{tpu_custom_call.1} parent=11 // pred_check
          %p473 = pneg %p128
        $region22: #{tpu_custom_call.1} parent=11 // pred_check_branch
          %475 = sbr.rel (%p473) target = $region24
        $region23: #{tpu_custom_call.1} parent=11 // pred_region
          %477 = vsyncadd [#allocation9], 0
          %s478 = sshll.u32 %s3, 4
          %s479 = int_to_ptr.hbm [resolvable:$true] %s478
          %s480 = sshll.u32 [#allocation8], 4
          %s481 = int_to_ptr.vmem [resolvable:$true] %s480
          %486 = dma.hbm_to_vmem [thread:$0]  %s479, 128, %s481, [#allocation9], 32, 32, 2
        $region24: #{tpu_custom_call.1} parent=11 // pred_fallthru
          _
        // Predicated region
        $region25: #{tpu_custom_call.1} parent=11 // pred_check
          %p487 = pneg %p149
        $region26: #{tpu_custom_call.1} parent=11 // pred_check_branch
          %489 = sbr.rel (%p487) target = $region28
        $region27: #{tpu_custom_call.1} parent=11 // pred_region
          %491 = vsyncadd [#allocation9], 0
          %s492 = sshll.u32 %s4, 4
          %s493 = int_to_ptr.hbm [resolvable:$true] %s492
          %s494 = sshll.u32 [#allocation10], 4
          %s495 = int_to_ptr.vmem [resolvable:$true] %s494
          %500 = dma.hbm_to_vmem [thread:$0]  %s493, 128, %s495, [#allocation9], 32, 32, 2
        $region28: #{tpu_custom_call.1} parent=11 // pred_fallthru
          _
        // Predicated region
        $region29: #{tpu_custom_call.1} parent=11 // pred_check
          %p501 = pneg %p170
        $region30: #{tpu_custom_call.1} parent=11 // pred_check_branch
          %503 = sbr.rel (%p501) target = $region32
        $region31: #{tpu_custom_call.1} parent=11 // pred_region
          %505 = vsyncadd [#allocation12], 0
          %s506 = sshll.u32 %s5, 4
          %s507 = int_to_ptr.hbm [resolvable:$true] %s506
          %s508 = sshll.u32 [#allocation11], 4
          %s509 = int_to_ptr.vmem [resolvable:$true] %s508
          %514 = dma.hbm_to_vmem [thread:$0]  %s507, 8192, %s509, [#allocation12], 256, 256, 16
        $region32: #{tpu_custom_call.1} parent=11 // pred_fallthru
          _
        // Predicated region
        $region33: #{tpu_custom_call.1} parent=11 // pred_check
          %p515 = pneg %p191
        $region34: #{tpu_custom_call.1} parent=11 // pred_check_branch
          %517 = sbr.rel (%p515) target = $region36
        $region35: #{tpu_custom_call.1} parent=11 // pred_region
          %519 = vsyncadd [#allocation12], 0
          %s520 = sshll.u32 %s6, 4
          %s521 = int_to_ptr.hbm [resolvable:$true] %s520
          %s522 = sshll.u32 [#allocation13], 4
          %s523 = int_to_ptr.vmem [resolvable:$true] %s522
          %528 = dma.hbm_to_vmem [thread:$0]  %s521, 6144, %s523, [#allocation12], 256, 256, 16
        $region36: #{tpu_custom_call.1} parent=11 // pred_fallthru
          _
        // Predicated region
        $region37: #{tpu_custom_call.1} parent=11 // pred_check
          %p529 = pneg %p212
        $region38: #{tpu_custom_call.1} parent=11 // pred_check_branch
          %531 = sbr.rel (%p529) target = $region40
        $region39: #{tpu_custom_call.1} parent=11 // pred_region
          %533 = vsyncadd [#allocation15], 0
          %s534 = sshll.u32 %s7, 4
          %s535 = int_to_ptr.hbm [resolvable:$true] %s534
          %s536 = sshll.u32 [#allocation14], 4
          %s537 = int_to_ptr.vmem [resolvable:$true] %s536
          %542 = dma.hbm_to_vmem [thread:$0]  %s535, 3072, %s537, [#allocation15], 384, 384, 24
        $region40: #{tpu_custom_call.1} parent=11 // pred_fallthru
          _
        // Predicated region
        $region41: #{tpu_custom_call.1} parent=11 // pred_check
          %p543 = pneg %p233
        $region42: #{tpu_custom_call.1} parent=11 // pred_check_branch
          %545 = sbr.rel (%p543) target = $region44
        $region43: #{tpu_custom_call.1} parent=11 // pred_region
          %547 = vsyncadd [#allocation15], 0
          %s548 = sshll.u32 %s8, 4
          %s549 = int_to_ptr.hbm [resolvable:$true] %s548
          %s550 = sshll.u32 [#allocation16], 4
          %s551 = int_to_ptr.vmem [resolvable:$true] %s550
          %556 = dma.hbm_to_vmem [thread:$0]  %s549, 2048, %s551, [#allocation15], 256, 256, 16
        $region44: #{tpu_custom_call.1} parent=11 // pred_fallthru
          _
        // Predicated region
        $region45: #{tpu_custom_call.1} parent=11 // pred_check
          %p557 = pneg %p254
        $region46: #{tpu_custom_call.1} parent=11 // pred_check_branch
          %559 = sbr.rel (%p557) target = $region48
        $region47: #{tpu_custom_call.1} parent=11 // pred_region
          %561 = vsyncadd [#allocation18], 0
          %s562 = sshll.u32 %s9, 4
          %s563 = int_to_ptr.hbm [resolvable:$true] %s562
          %s564 = sshll.u32 [#allocation17], 4
          %s565 = int_to_ptr.vmem [resolvable:$true] %s564
          %570 = dma.hbm_to_vmem [thread:$0]  %s563, 1024, %s565, [#allocation18], 256, 256, 16
        $region48: #{tpu_custom_call.1} parent=11 // pred_fallthru
          _
        // Predicated region
        $region49: #{tpu_custom_call.1} parent=11 // pred_check
          %p571 = pneg %p275
        $region50: #{tpu_custom_call.1} parent=11 // pred_check_branch
          %573 = sbr.rel (%p571) target = $region52
        $region51: #{tpu_custom_call.1} parent=11 // pred_region
          %575 = vsyncadd [#allocation18], 0
          %s576 = sshll.u32 %s10, 4
          %s577 = int_to_ptr.hbm [resolvable:$true] %s576
          %s578 = sshll.u32 [#allocation19], 4
          %s579 = int_to_ptr.vmem [resolvable:$true] %s578
          %584 = dma.hbm_to_vmem [thread:$0]  %s577, 1024, %s579, [#allocation18], 128, 128, 8
        $region52: #{tpu_custom_call.1} parent=11 // pred_fallthru
          _
        // Predicated region
        $region53: #{tpu_custom_call.1} parent=11 // pred_check
          %p585 = pneg %p296
        $region54: #{tpu_custom_call.1} parent=11 // pred_check_branch
          %587 = sbr.rel (%p585) target = $region56
        $region55: #{tpu_custom_call.1} parent=11 // pred_region
          _
        $region56: #{tpu_custom_call.1} parent=11 // pred_fallthru
          _
        // Predicated region
        $region57: #{tpu_custom_call.1} parent=11 // pred_check
          %p588 = pneg %p317
        $region58: #{tpu_custom_call.1} parent=11 // pred_check_branch
          %590 = sbr.rel (%p588) target = $region60
        $region59: #{tpu_custom_call.1} parent=11 // pred_region
          _
        $region60: #{tpu_custom_call.1} parent=11 // pred_fallthru
          _
        // Predicated region
        $region61: #{tpu_custom_call.1} parent=11 // pred_check
          %p591 = pneg %p338
        $region62: #{tpu_custom_call.1} parent=11 // pred_check_branch
          %593 = sbr.rel (%p591) target = $region64
        $region63: #{tpu_custom_call.1} parent=11 // pred_region
          _
        $region64: #{tpu_custom_call.1} parent=11 // pred_fallthru
          _
      $region12: #{tpu_custom_call.1} parent=5 // pred_fallthru
        _
      %p594 = scmp.lt.s32.totalorder %s39, 6
      // Predicated region
      $region65: #{tpu_custom_call.1} parent=5 // pred_check
        %p595 = pneg %p594
      $region66: #{tpu_custom_call.1} parent=5 // pred_check_branch
        %597 = sbr.rel (%p595) target = $region68
      $region67: #{tpu_custom_call.1} parent=5 // pred_region
        // Predicated region
        $region69: #{tpu_custom_call.1} parent=67 // pred_check
          %p598 = pneg %p59
        $region70: #{tpu_custom_call.1} parent=67 // pred_check_branch
          %600 = sbr.rel (%p598) target = $region72
        $region71: #{tpu_custom_call.1} parent=67 // pred_region
          %s601 = sand.u32 %s49, 1
          %s602 = scalar_lea.sflag [#allocation3], %s601
          %s603 = sand.u32 %s49, 1
          %s604 = smul.addr %s603, 2
          %s605 = scalar_lea.vmem [#allocation2], %s604
          %607 = vsyncadd %s602, 0
          %s608 = smul.addr %s39, 2
          %s609 = scalar_lea.hbm %s0, %s608
          %s611 = sshll.u32 %s609, 4
          %s612 = int_to_ptr.hbm [resolvable:$true] %s611
          %s613 = sshll.u32 %s605, 4
          %s614 = int_to_ptr.vmem [resolvable:$true] %s613
          %616 = dma.hbm_to_vmem [thread:$0]  %s612, 32, %s614, %s602
        $region72: #{tpu_custom_call.1} parent=67 // pred_fallthru
          _
      $region68: #{tpu_custom_call.1} parent=5 // pred_fallthru
        _
      %p617 = scmp.le.s32.totalorder 1, %s39
      %p618 = scmp.lt.s32.totalorder %s39, 7
      %p619 = pnand %p617, %p618
      %p620 = pneg %p619
      // Predicated region
      $region73: #{tpu_custom_call.1} parent=5 // pred_check
        _
      $region74: #{tpu_custom_call.1} parent=5 // pred_check_branch
        %622 = sbr.rel (%p619) target = $region76
      $region75: #{tpu_custom_call.1} parent=5 // pred_region
        %s623 = ssub.s32 %s39, 1
        %s624 = sand.u32 %s52, 1
        %s625 = scalar_lea.sflag [#allocation3], %s624
        %s626 = sand.u32 %s52, 1
        %s627 = smul.addr %s626, 2
        %s628 = scalar_lea.vmem [#allocation2], %s627
        // Predicated region
        $region77: #{tpu_custom_call.1} parent=75 // pred_check
          %p629 = pneg %p65
        $region78: #{tpu_custom_call.1} parent=75 // pred_check_branch
          %631 = sbr.rel (%p629) target = $region80
        $region79: #{tpu_custom_call.1} parent=75 // pred_region
          %633 = dma.done %s625, 32
        $region80: #{tpu_custom_call.1} parent=75 // pred_fallthru
          _
        // Predicated region
        $region81: #{tpu_custom_call.1} parent=75 // pred_check
          %p634 = pneg %p86
        $region82: #{tpu_custom_call.1} parent=75 // pred_check_branch
          %636 = sbr.rel (%p634) target = $region84
        $region83: #{tpu_custom_call.1} parent=75 // pred_region
          %638 = dma.done [#allocation6], 256
        $region84: #{tpu_custom_call.1} parent=75 // pred_fallthru
          _
        // Predicated region
        $region85: #{tpu_custom_call.1} parent=75 // pred_check
          %p639 = pneg %p107
        $region86: #{tpu_custom_call.1} parent=75 // pred_check_branch
          %641 = sbr.rel (%p639) target = $region88
        $region87: #{tpu_custom_call.1} parent=75 // pred_region
          %643 = dma.done [#allocation6], 32
        $region88: #{tpu_custom_call.1} parent=75 // pred_fallthru
          _
        // Predicated region
        $region89: #{tpu_custom_call.1} parent=75 // pred_check
          %p644 = pneg %p128
        $region90: #{tpu_custom_call.1} parent=75 // pred_check_branch
          %646 = sbr.rel (%p644) target = $region92
        $region91: #{tpu_custom_call.1} parent=75 // pred_region
          %648 = dma.done [#allocation9], 128
        $region92: #{tpu_custom_call.1} parent=75 // pred_fallthru
          _
        // Predicated region
        $region93: #{tpu_custom_call.1} parent=75 // pred_check
          %p649 = pneg %p149
        $region94: #{tpu_custom_call.1} parent=75 // pred_check_branch
          %651 = sbr.rel (%p649) target = $region96
        $region95: #{tpu_custom_call.1} parent=75 // pred_region
          %653 = dma.done [#allocation9], 128
        $region96: #{tpu_custom_call.1} parent=75 // pred_fallthru
          _
        // Predicated region
        $region97: #{tpu_custom_call.1} parent=75 // pred_check
          %p654 = pneg %p170
        $region98: #{tpu_custom_call.1} parent=75 // pred_check_branch
          %656 = sbr.rel (%p654) target = $region100
        $region99: #{tpu_custom_call.1} parent=75 // pred_region
          %658 = dma.done [#allocation12], 8192
        $region100: #{tpu_custom_call.1} parent=75 // pred_fallthru
          _
        // Predicated region
        $region101: #{tpu_custom_call.1} parent=75 // pred_check
          %p659 = pneg %p191
        $region102: #{tpu_custom_call.1} parent=75 // pred_check_branch
          %661 = sbr.rel (%p659) target = $region104
        $region103: #{tpu_custom_call.1} parent=75 // pred_region
          %663 = dma.done [#allocation12], 6144
        $region104: #{tpu_custom_call.1} parent=75 // pred_fallthru
          _
        // Predicated region
        $region105: #{tpu_custom_call.1} parent=75 // pred_check
          %p664 = pneg %p212
        $region106: #{tpu_custom_call.1} parent=75 // pred_check_branch
          %666 = sbr.rel (%p664) target = $region108
        $region107: #{tpu_custom_call.1} parent=75 // pred_region
          %668 = dma.done [#allocation15], 3072
        $region108: #{tpu_custom_call.1} parent=75 // pred_fallthru
          _
        // Predicated region
        $region109: #{tpu_custom_call.1} parent=75 // pred_check
          %p669 = pneg %p233
        $region110: #{tpu_custom_call.1} parent=75 // pred_check_branch
          %671 = sbr.rel (%p669) target = $region112
        $region111: #{tpu_custom_call.1} parent=75 // pred_region
          %673 = dma.done [#allocation15], 2048
        $region112: #{tpu_custom_call.1} parent=75 // pred_fallthru
          _
        // Predicated region
        $region113: #{tpu_custom_call.1} parent=75 // pred_check
          %p674 = pneg %p254
        $region114: #{tpu_custom_call.1} parent=75 // pred_check_branch
          %676 = sbr.rel (%p674) target = $region116
        $region115: #{tpu_custom_call.1} parent=75 // pred_region
          %678 = dma.done [#allocation18], 1024
        $region116: #{tpu_custom_call.1} parent=75 // pred_fallthru
          _
        // Predicated region
        $region117: #{tpu_custom_call.1} parent=75 // pred_check
          %p679 = pneg %p275
        $region118: #{tpu_custom_call.1} parent=75 // pred_check_branch
          %681 = sbr.rel (%p679) target = $region120
        $region119: #{tpu_custom_call.1} parent=75 // pred_region
          %683 = dma.done [#allocation18], 1024
        $region120: #{tpu_custom_call.1} parent=75 // pred_fallthru
          _
        %s684 = sand.u32 %s52, 1
        %s685 = scalar_lea.sflag [#allocation3], %s684
        %s686 = sand.u32 %s52, 1
        %s687 = smul.addr %s686, 2
        %s688 = scalar_lea.vmem [#allocation2], %s687
        %p689 = pneg %p65
        %p690 = pneg %p62
        %p691 = pneg %p86
        %p692 = pneg %p83
        %p693 = pneg %p107
        %p694 = pneg %p104
        %p695 = pneg %p128
        %p696 = pneg %p125
        %p697 = pneg %p149
        %p698 = pneg %p146
        %p699 = pneg %p170
        %p700 = pneg %p167
        %p701 = pneg %p191
        %p702 = pneg %p188
        %p703 = pneg %p212
        %p704 = pneg %p209
        %p705 = pneg %p233
        %p706 = pneg %p230
        %p707 = pneg %p254
        %p708 = pneg %p251
        %p709 = pneg %p275
        %p710 = pneg %p272
        %p711 = pneg %p296
        %p712 = pneg %p293
        %p713 = pneg %p317
        %p714 = pneg %p314
        %p715 = pneg %p338
        %p716 = pneg %p335
        %p717 = pneg %p364
        %p718 = pneg %p361
        %s719 = sand.u32 %s351, 1
        %s720 = scalar_lea.sflag [#allocation4], %s719
        %s721 = sand.u32 %s351, 1
        %s722 = smul.addr %s721, 2
        %s723 = scalar_lea.vmem [#allocation20], %s722
        %p724 = pneg %p390
        %p725 = pneg %p387
        %s726 = sand.u32 %s44, 1
        %s727 = scalar_lea.sflag [#allocation22], %s726
        %s728 = sand.u32 %s377, 1
        %s729 = smul.addr %s728, 2
        %s730 = scalar_lea.vmem [#allocation21], %s729
        %p731 = pneg %p411
        %p732 = pneg %p408
        %p733 = pneg %p432
        %p734 = pneg %p429
        %p735 = scmp.eq.s32.totalorder %s44, 0
        // Predicated region
        $region121: #{tpu_custom_call.1} parent=75 // pred_check
          %p736 = pneg %p735
        $region122: #{tpu_custom_call.1} parent=75 // pred_check_branch
          %738 = sbr.rel (%p736) target = $region124
        $region123: #{tpu_custom_call.1} parent=75 // pred_region
          %v739 = vld [vmem:[#allocation8] sm:$0x3]
          %v740 = vld [vmem:[#allocation8 + $0x2] sm:$0x3]
          %v741 = vld [vmem:[#allocation8 + $0x4] sm:$0x3]
          %v742 = vld [vmem:[#allocation8 + $0x6] sm:$0x3]
          %vm743 = vcmask 517120
          %744 = vst.msk [vmem:[#allocation23] sm:$0x3] %vm743, %v739
          %745 = vst.msk [vmem:[#allocation23 + $0x2] sm:$0x3] %vm743, %v740
          %746 = vst.msk [vmem:[#allocation23 + $0x4] sm:$0x3] %vm743, %v741
          %747 = vst.msk [vmem:[#allocation23 + $0x6] sm:$0x3] %vm743, %v742
          %v748 = vld [vmem:[#allocation10] sm:$0x3]
          %v749 = vld [vmem:[#allocation10 + $0x2] sm:$0x3]
          %v750 = vld [vmem:[#allocation10 + $0x4] sm:$0x3]
          %v751 = vld [vmem:[#allocation10 + $0x6] sm:$0x3]
          %752 = vst.msk [vmem:[#allocation24] sm:$0x3] %vm743, %v748
          %753 = vst.msk [vmem:[#allocation24 + $0x2] sm:$0x3] %vm743, %v749
          %754 = vst.msk [vmem:[#allocation24 + $0x4] sm:$0x3] %vm743, %v750
          %755 = vst.msk [vmem:[#allocation24 + $0x6] sm:$0x3] %vm743, %v751
        $region124: #{tpu_custom_call.1} parent=75 // pred_fallthru
          _
        %v756 = vld [vmem:[%s628] sm:$0x3]
        %v757 = vld [vmem:[#allocation5] sm:$0xff]
        %v758 = vld [vmem:[#allocation5 + $0x8] sm:$0xff]
        %v759 = vld [vmem:[#allocation23] sm:$0x3]
        %v760 = vld [vmem:[#allocation23 + $0x2] sm:$0x3]
        %v761 = vld [vmem:[#allocation23 + $0x4] sm:$0x3]
        %v762 = vld [vmem:[#allocation23 + $0x6] sm:$0x3]
        %v763 = vld [vmem:[#allocation24] sm:$0x3]
        %v764 = vld [vmem:[#allocation24 + $0x2] sm:$0x3]
        %v765 = vld [vmem:[#allocation24 + $0x4] sm:$0x3]
        %v766 = vld [vmem:[#allocation24 + $0x6] sm:$0x3]
        %v767 = vld [vmem:[#allocation14] sm:$0xff]
        %v768 = vld [vmem:[#allocation14 + $0x8] sm:$0xff]
        %v769 = vld [vmem:[#allocation14 + $0x10] sm:$0xff]
        %v770 = vld [vmem:[#allocation14 + $0x18] sm:$0xff]
        %v771 = vld [vmem:[#allocation14 + $0x20] sm:$0xff]
        %v772 = vld [vmem:[#allocation14 + $0x28] sm:$0xff]
        %v773 = vld [vmem:[#allocation14 + $0x30] sm:$0xff]
        %v774 = vld [vmem:[#allocation14 + $0x38] sm:$0xff]
        %v775 = vld [vmem:[#allocation14 + $0x40] sm:$0xff]
        %v776 = vld [vmem:[#allocation14 + $0x48] sm:$0xff]
        %v777 = vld [vmem:[#allocation14 + $0x50] sm:$0xff]
        %v778 = vld [vmem:[#allocation14 + $0x58] sm:$0xff]
        %v779 = vld [vmem:[#allocation14 + $0x60] sm:$0xff]
        %v780 = vld [vmem:[#allocation14 + $0x68] sm:$0xff]
        %v781 = vld [vmem:[#allocation14 + $0x70] sm:$0xff]
        %v782 = vld [vmem:[#allocation14 + $0x78] sm:$0xff]
        %v783 = vld [vmem:[#allocation14 + $0x80] sm:$0xff]
        %v784 = vld [vmem:[#allocation14 + $0x88] sm:$0xff]
        %v785 = vld [vmem:[#allocation14 + $0x90] sm:$0xff]
        %v786 = vld [vmem:[#allocation14 + $0x98] sm:$0xff]
        %v787 = vld [vmem:[#allocation14 + $0xa0] sm:$0xff]
        %v788 = vld [vmem:[#allocation14 + $0xa8] sm:$0xff]
        %v789 = vld [vmem:[#allocation14 + $0xb0] sm:$0xff]
        %v790 = vld [vmem:[#allocation14 + $0xb8] sm:$0xff]
        %vm791 = vcmask 523264
        %v793 = vsel %vm791, %v762, 0
        %795 = vmatpush.msra.mxu0 0.0
        %796 = vmatpush.msra.mxu0 0.0
        %797 = vmatpush.msra.mxu0 0.0
        %798 = vmatpush.msra.mxu0 0.0
        %799 = vmatpush.msra.mxu0 0.0
        %800 = vmatpush.msra.mxu0 0.0
        %801 = vmatpush.msra.mxu0 0.0
        %802 = vmatpush.msra.mxu0 0.0
        %803 = vmatpush.msra.mxu0 %v788
        %804 = vmatpush.msra.mxu0 %v785
        %805 = vmatpush.msra.mxu0 %v782
        %806 = vmatpush.msra.mxu0 %v779
        %807 = vmatpush.msra.mxu0 %v776
        %808 = vmatpush.msra.mxu0 %v773
        %809 = vmatpush.msra.mxu0 %v770
        %810 = vmatpush.msra.mxu0 %v767
        %811 = vmatmul.f32.gmra.mxu0 %v793
        %v812 = vpop.f32.mrf.mxu0
        %v813 = vadd.f32 0.0, %v812
        %814 = vdwg.mxu0
        %815 = vmatpush.msra.mxu0 0.0
        %816 = vmatpush.msra.mxu0 0.0
        %817 = vmatpush.msra.mxu0 0.0
        %818 = vmatpush.msra.mxu0 0.0
        %819 = vmatpush.msra.mxu0 0.0
        %820 = vmatpush.msra.mxu0 0.0
        %821 = vmatpush.msra.mxu0 0.0
        %822 = vmatpush.msra.mxu0 0.0
        %823 = vmatpush.msra.mxu0 %v789
        %824 = vmatpush.msra.mxu0 %v786
        %825 = vmatpush.msra.mxu0 %v783
        %826 = vmatpush.msra.mxu0 %v780
        %827 = vmatpush.msra.mxu0 %v777
        %828 = vmatpush.msra.mxu0 %v774
        %829 = vmatpush.msra.mxu0 %v771
        %830 = vmatpush.msra.mxu0 %v768
        %831 = vmatmul.f32.gmra.mxu0 %v793
        %v832 = vpop.f32.mrf.mxu0
        %v833 = vadd.f32 0.0, %v832
        %834 = vdwg.mxu0
        %835 = vmatpush.msra.mxu0 0.0
        %836 = vmatpush.msra.mxu0 0.0
        %837 = vmatpush.msra.mxu0 0.0
        %838 = vmatpush.msra.mxu0 0.0
        %839 = vmatpush.msra.mxu0 0.0
        %840 = vmatpush.msra.mxu0 0.0
        %841 = vmatpush.msra.mxu0 0.0
        %842 = vmatpush.msra.mxu0 0.0
        %843 = vmatpush.msra.mxu0 %v790
        %844 = vmatpush.msra.mxu0 %v787
        %845 = vmatpush.msra.mxu0 %v784
        %846 = vmatpush.msra.mxu0 %v781
        %847 = vmatpush.msra.mxu0 %v778
        %848 = vmatpush.msra.mxu0 %v775
        %849 = vmatpush.msra.mxu0 %v772
        %850 = vmatpush.msra.mxu0 %v769
        %851 = vmatmul.f32.gmra.mxu0 %v793
        %v852 = vpop.f32.mrf.mxu0
        %v853 = vadd.f32 0.0, %v852
        %854 = vdwg.mxu0
        %s855 = scalar_lea.vmem %s11, 6
        %v856 = vld [vmem:[%s855] sm:$0x3]
        %v858 = vperm.slane %v856, 0
        %v859 = vperm.slane %v856, 1
        %v862 = vadd.f32 %v813, %v858
        %v863 = vadd.f32 %v833, %v859
        %v865 = vrot.slane %v853, 1
        %v866 = vperm.slane %v853, 0
        %v867 = vperm.slane %v865, 0
        %v870 = vmul.f32 %v866, %v757
        %v871 = vmul.f32 %v867, %v758
        %v872 = vsel %vm791, %v870, 0.0
        %873 = vadd.xlane.f32.xlu0 %v872
        %v874 = vpop.xlane.xlu0 %873
        %v875 = vsel %vm791, %v871, 0.0
        %876 = vadd.xlane.f32.xlu0 %v875
        %v877 = vpop.xlane.xlu0 %876
        %v878 = vld [vmem:[#allocation7] sm:$0x3]
        %v880 = vperm.slane %v878, 0
        %v881 = vlaneseq
        %v882 = vshrl.u32 %v881, 7
        %884 = vset.pattern.permute.xlu0 %v882
        %885 = vperm.xlu0 %884, %v880
        %v886 = vpop.permute.xlu0 %885
        %v887 = vperm.slane %v878, 1
        %v888 = vlaneseq
        %v889 = vshrl.u32 %v888, 7
        %891 = vset.pattern.permute.xlu0 %v889
        %892 = vperm.xlu0 %891, %v887
        %v893 = vpop.permute.xlu0 %892
        %v896 = vadd.f32 %v874, %v886
        %v897 = vadd.f32 %v877, %v893
        %900 = vset.pattern.permute.xlu0 0
        %901 = vperm.xlu0 %900, %v896
        %v902 = vpop.permute.xlu0 %901
        %903 = vset.pattern.permute.xlu0 0
        %904 = vperm.xlu0 %903, %v897
        %v905 = vpop.permute.xlu0 %904
        %v906 = vlaneseq
        %v907 = vand.u32 %v906, 127
        %v908 = vperm.slane %v902, %v907
        %v909 = vperm.slane %v905, %v907
        %vm910 = vcmask 1041409
        %v911 = vsel %vm910, %v909, %v908
        %vm913 = vcmask 58368
        %v914 = vsel %vm913, %v911, -inf
        %915 = vmax.xlane.f32.xlu0 %v914
        %v916 = vpop.xlane.xlu0 %915
        %v918 = vperm.slane %v916, 0
        %v919 = vperm.slane %v916, 1
        %v922 = vsub.f32 %v896, %v918
        %v923 = vsub.f32 %v897, %v919
        %v924 = vmul.f32 %v922, 1.442695
        %v925 = vpow.pop %v924
        %v926 = vmul.f32 %v923, 1.442695
        %v927 = vpow.pop %v926
        %930 = vset.pattern.permute.xlu0 0
        %931 = vperm.xlu0 %930, %v925
        %v932 = vpop.permute.xlu0 %931
        %933 = vset.pattern.permute.xlu0 0
        %934 = vperm.xlu0 %933, %v927
        %v935 = vpop.permute.xlu0 %934
        %v936 = vperm.slane %v932, %v907
        %v937 = vperm.slane %v935, %v907
        %v938 = vsel %vm910, %v937, %v936
        %v940 = vsel %vm913, %v938, 0.0
        %941 = vadd.xlane.f32.xlu0 %v940
        %v942 = vpop.xlane.xlu0 %941
        %v944 = vperm.slane %v942, 0
        %v945 = vperm.slane %v942, 1
        %v948 = vrcp.pop %v944
        %v949 = vmul.f32 %v944, %v948
        %v950 = vsub.f32 1.0, %v949
        %v951 = vmul.f32 %v948, %v950
        %v952 = vadd.f32 %v948, %v951
        %vm953 = vweird.f32 %v944
        %vm954 = vweird.f32 %v948
        %vm955 = vmor %vm953, %vm954
        %v956 = vsel %vm955, %v948, %v952
        %v957 = vand.u32 2147483647, %v944
        %vm958 = vcmp.eq.f32.partialorder %v957, 8.507059e+37
        %v959 = vand.u32 %v944, 2147483648
        %v960 = vor.u32 1.1754944e-38, %v959
        %v961 = vsel %vm958, %v960, %v956
        %v962 = vmul.f32 %v925, %v961
        %v963 = vrcp.pop %v945
        %v964 = vmul.f32 %v945, %v963
        %v965 = vsub.f32 1.0, %v964
        %v966 = vmul.f32 %v963, %v965
        %v967 = vadd.f32 %v963, %v966
        %vm968 = vweird.f32 %v945
        %vm969 = vweird.f32 %v963
        %vm970 = vmor %vm968, %vm969
        %v971 = vsel %vm970, %v963, %v967
        %v972 = vand.u32 2147483647, %v945
        %vm973 = vcmp.eq.f32.partialorder %v972, 8.507059e+37
        %v974 = vand.u32 %v945, 2147483648
        %v975 = vor.u32 1.1754944e-38, %v974
        %v976 = vsel %vm973, %v975, %v971
        %v977 = vmul.f32 %v927, %v976
        %980 = vset.pattern.permute.xlu0 0
        %981 = vperm.xlu0 %980, %v962
        %v982 = vpop.permute.xlu0 %981
        %983 = vset.pattern.permute.xlu0 0
        %984 = vperm.xlu0 %983, %v977
        %v985 = vpop.permute.xlu0 %984
        %v986 = vperm.slane %v982, %v907
        %v987 = vperm.slane %v985, %v907
        %v988 = vsel %vm910, %v987, %v986
        %990 = vst.msk [vmem:[%s730] sm:$0x3] %vm913, %v988
        %v993 = vmul.f32 %v982, %v757
        %v994 = vmul.f32 %v985, %v758
        %v995 = vsel %vm791, %v993, 0.0
        %v996 = vrot.slane %v995, 4
        %v997 = vadd.f32 %v995, %v996
        %v998 = vrot.slane %v997, 2
        %v999 = vadd.f32 %v997, %v998
        %v1000 = vrot.slane %v999, 1
        %v1001 = vadd.f32 %v999, %v1000
        %v1002 = vsel %vm791, %v994, 0.0
        %v1003 = vrot.slane %v1002, 4
        %v1004 = vadd.f32 %v1002, %v1003
        %v1005 = vrot.slane %v1004, 2
        %v1006 = vadd.f32 %v1004, %v1005
        %v1007 = vrot.slane %v1006, 1
        %v1008 = vadd.f32 %v1006, %v1007
        %v1009 = vld [vmem:[#allocation16] sm:$0xff]
        %v1010 = vld [vmem:[#allocation16 + $0x8] sm:$0xff]
        %v1011 = vld [vmem:[#allocation16 + $0x10] sm:$0xff]
        %v1012 = vld [vmem:[#allocation16 + $0x18] sm:$0xff]
        %v1013 = vld [vmem:[#allocation16 + $0x20] sm:$0xff]
        %v1014 = vld [vmem:[#allocation16 + $0x28] sm:$0xff]
        %v1015 = vld [vmem:[#allocation16 + $0x30] sm:$0xff]
        %v1016 = vld [vmem:[#allocation16 + $0x38] sm:$0xff]
        %v1017 = vld [vmem:[#allocation16 + $0x40] sm:$0xff]
        %v1018 = vld [vmem:[#allocation16 + $0x48] sm:$0xff]
        %v1019 = vld [vmem:[#allocation16 + $0x50] sm:$0xff]
        %v1020 = vld [vmem:[#allocation16 + $0x58] sm:$0xff]
        %v1021 = vld [vmem:[#allocation16 + $0x60] sm:$0xff]
        %v1022 = vld [vmem:[#allocation16 + $0x68] sm:$0xff]
        %v1023 = vld [vmem:[#allocation16 + $0x70] sm:$0xff]
        %v1024 = vld [vmem:[#allocation16 + $0x78] sm:$0xff]
        %v1027 = vsel %vm910, %v1008, %v1001
        %v1028 = vsel %vm791, %v1027, 0
        %1030 = vmatpush.msra.mxu0 0.0
        %1031 = vmatpush.msra.mxu0 0.0
        %1032 = vmatpush.msra.mxu0 0.0
        %1033 = vmatpush.msra.mxu0 0.0
        %1034 = vmatpush.msra.mxu0 0.0
        %1035 = vmatpush.msra.mxu0 0.0
        %1036 = vmatpush.msra.mxu0 0.0
        %1037 = vmatpush.msra.mxu0 0.0
        %1038 = vmatpush.msra.mxu0 %v1023
        %1039 = vmatpush.msra.mxu0 %v1021
        %1040 = vmatpush.msra.mxu0 %v1019
        %1041 = vmatpush.msra.mxu0 %v1017
        %1042 = vmatpush.msra.mxu0 %v1015
        %1043 = vmatpush.msra.mxu0 %v1013
        %1044 = vmatpush.msra.mxu0 %v1011
        %1045 = vmatpush.msra.mxu0 %v1009
        %1046 = vmatmul.f32.gmra.mxu0 %v1028
        %v1047 = vpop.f32.mrf.mxu0
        %v1048 = vadd.f32 0.0, %v1047
        %1049 = vdwg.mxu0
        %1050 = vmatpush.msra.mxu0 0.0
        %1051 = vmatpush.msra.mxu0 0.0
        %1052 = vmatpush.msra.mxu0 0.0
        %1053 = vmatpush.msra.mxu0 0.0
        %1054 = vmatpush.msra.mxu0 0.0
        %1055 = vmatpush.msra.mxu0 0.0
        %1056 = vmatpush.msra.mxu0 0.0
        %1057 = vmatpush.msra.mxu0 0.0
        %1058 = vmatpush.msra.mxu0 %v1024
        %1059 = vmatpush.msra.mxu0 %v1022
        %1060 = vmatpush.msra.mxu0 %v1020
        %1061 = vmatpush.msra.mxu0 %v1018
        %1062 = vmatpush.msra.mxu0 %v1016
        %1063 = vmatpush.msra.mxu0 %v1014
        %1064 = vmatpush.msra.mxu0 %v1012
        %1065 = vmatpush.msra.mxu0 %v1010
        %1066 = vmatmul.f32.gmra.mxu0 %v1028
        %v1067 = vpop.f32.mrf.mxu0
        %v1068 = vadd.f32 0.0, %v1067
        %1069 = vdwg.mxu0
        %v1070 = vld [vmem:[#allocation17] sm:$0xff]
        %v1071 = vld [vmem:[#allocation17 + $0x8] sm:$0xff]
        %v1072 = vld [vmem:[#allocation17 + $0x10] sm:$0xff]
        %v1073 = vld [vmem:[#allocation17 + $0x18] sm:$0xff]
        %v1074 = vld [vmem:[#allocation17 + $0x20] sm:$0xff]
        %v1075 = vld [vmem:[#allocation17 + $0x28] sm:$0xff]
        %v1076 = vld [vmem:[#allocation17 + $0x30] sm:$0xff]
        %v1077 = vld [vmem:[#allocation17 + $0x38] sm:$0xff]
        %vm1078 = vcmask 261120
        %v1080 = vsel %vm1078, %v756, 0
        %1082 = vmatpush.msra.mxu0 0.0
        %1083 = vmatpush.msra.mxu0 0.0
        %1084 = vmatpush.msra.mxu0 0.0
        %1085 = vmatpush.msra.mxu0 0.0
        %1086 = vmatpush.msra.mxu0 0.0
        %1087 = vmatpush.msra.mxu0 0.0
        %1088 = vmatpush.msra.mxu0 0.0
        %1089 = vmatpush.msra.mxu0 0.0
        %1090 = vmatpush.msra.mxu0 0.0
        %1091 = vmatpush.msra.mxu0 0.0
        %1092 = vmatpush.msra.mxu0 0.0
        %1093 = vmatpush.msra.mxu0 0.0
        %1094 = vmatpush.msra.mxu0 %v1076
        %1095 = vmatpush.msra.mxu0 %v1074
        %1096 = vmatpush.msra.mxu0 %v1072
        %1097 = vmatpush.msra.mxu0 %v1070
        %1098 = vmatmul.f32.gmra.mxu0 %v1080
        %v1099 = vpop.f32.mrf.mxu0
        %v1100 = vadd.f32 0.0, %v1099
        %1101 = vdwg.mxu0
        %1102 = vmatpush.msra.mxu0 0.0
        %1103 = vmatpush.msra.mxu0 0.0
        %1104 = vmatpush.msra.mxu0 0.0
        %1105 = vmatpush.msra.mxu0 0.0
        %1106 = vmatpush.msra.mxu0 0.0
        %1107 = vmatpush.msra.mxu0 0.0
        %1108 = vmatpush.msra.mxu0 0.0
        %1109 = vmatpush.msra.mxu0 0.0
        %1110 = vmatpush.msra.mxu0 0.0
        %1111 = vmatpush.msra.mxu0 0.0
        %1112 = vmatpush.msra.mxu0 0.0
        %1113 = vmatpush.msra.mxu0 0.0
        %1114 = vmatpush.msra.mxu0 %v1077
        %1115 = vmatpush.msra.mxu0 %v1075
        %1116 = vmatpush.msra.mxu0 %v1073
        %1117 = vmatpush.msra.mxu0 %v1071
        %1118 = vmatmul.f32.gmra.mxu0 %v1080
        %v1119 = vpop.f32.mrf.mxu0
        %v1120 = vadd.f32 0.0, %v1119
        %1121 = vdwg.mxu0
        %v1122 = vadd.f32 %v1068, %v1120
        %v1123 = vld [vmem:[%s12] sm:$0x1]
        %v1125 = vperm.slane %v1123, 0
        %v1127 = vadd.f32 %v1122, %v1125
        %v1128 = vadd.f32 %v1048, %v1100
        %v1129 = vld [vmem:[%s13] sm:$0x1]
        %v1131 = vperm.slane %v1129, 0
        %v1133 = vadd.f32 %v1128, %v1131
        %v1134 = vld [vmem:[#allocation13] sm:$0xff]
        %v1135 = vld [vmem:[#allocation13 + $0x8] sm:$0xff]
        %v1136 = vld [vmem:[#allocation13 + $0x10] sm:$0xff]
        %v1137 = vld [vmem:[#allocation13 + $0x18] sm:$0xff]
        %v1138 = vld [vmem:[#allocation13 + $0x20] sm:$0xff]
        %v1139 = vld [vmem:[#allocation13 + $0x28] sm:$0xff]
        %v1140 = vld [vmem:[#allocation13 + $0x30] sm:$0xff]
        %v1141 = vld [vmem:[#allocation13 + $0x38] sm:$0xff]
        %v1142 = vld [vmem:[#allocation13 + $0x40] sm:$0xff]
        %v1143 = vld [vmem:[#allocation13 + $0x48] sm:$0xff]
        %v1144 = vld [vmem:[#allocation13 + $0x50] sm:$0xff]
        %v1145 = vld [vmem:[#allocation13 + $0x58] sm:$0xff]
        %v1146 = vld [vmem:[#allocation13 + $0x60] sm:$0xff]
        %v1147 = vld [vmem:[#allocation13 + $0x68] sm:$0xff]
        %v1148 = vld [vmem:[#allocation13 + $0x70] sm:$0xff]
        %v1149 = vld [vmem:[#allocation13 + $0x78] sm:$0xff]
        %v1150 = vld [vmem:[%s11] sm:$0x3]
        %v1152 = vperm.slane %v1150, 0
        %v1153 = vperm.slane %v1150, 1
        %v1157 = vsel %vm791, %v759, 0
        %1159 = vmatpush.msra.mxu0 0.0
        %1160 = vmatpush.msra.mxu0 0.0
        %1161 = vmatpush.msra.mxu0 0.0
        %1162 = vmatpush.msra.mxu0 0.0
        %1163 = vmatpush.msra.mxu0 0.0
        %1164 = vmatpush.msra.mxu0 0.0
        %1165 = vmatpush.msra.mxu0 0.0
        %1166 = vmatpush.msra.mxu0 0.0
        %1167 = vmatpush.msra.mxu0 %v1148
        %1168 = vmatpush.msra.mxu0 %v1146
        %1169 = vmatpush.msra.mxu0 %v1144
        %1170 = vmatpush.msra.mxu0 %v1142
        %1171 = vmatpush.msra.mxu0 %v1140
        %1172 = vmatpush.msra.mxu0 %v1138
        %1173 = vmatpush.msra.mxu0 %v1136
        %1174 = vmatpush.msra.mxu0 %v1134
        %1175 = vmatmul.f32.gmra.mxu0 %v1157
        %v1176 = vpop.f32.mrf.mxu0
        %v1177 = vadd.f32 %v1152, %v1176
        %1178 = vdwg.mxu0
        %1179 = vmatpush.msra.mxu0 0.0
        %1180 = vmatpush.msra.mxu0 0.0
        %1181 = vmatpush.msra.mxu0 0.0
        %1182 = vmatpush.msra.mxu0 0.0
        %1183 = vmatpush.msra.mxu0 0.0
        %1184 = vmatpush.msra.mxu0 0.0
        %1185 = vmatpush.msra.mxu0 0.0
        %1186 = vmatpush.msra.mxu0 0.0
        %1187 = vmatpush.msra.mxu0 %v1149
        %1188 = vmatpush.msra.mxu0 %v1147
        %1189 = vmatpush.msra.mxu0 %v1145
        %1190 = vmatpush.msra.mxu0 %v1143
        %1191 = vmatpush.msra.mxu0 %v1141
        %1192 = vmatpush.msra.mxu0 %v1139
        %1193 = vmatpush.msra.mxu0 %v1137
        %1194 = vmatpush.msra.mxu0 %v1135
        %1195 = vmatmul.f32.gmra.mxu0 %v1157
        %v1196 = vpop.f32.mrf.mxu0
        %v1197 = vadd.f32 %v1153, %v1196
        %1198 = vdwg.mxu0
        %s1199 = scalar_lea.vmem [#allocation13], 128
        %v1200 = vld [vmem:[%s1199] sm:$0xff]
        %v1201 = vld [vmem:[%s1199 + $0x8] sm:$0xff]
        %v1202 = vld [vmem:[%s1199 + $0x10] sm:$0xff]
        %v1203 = vld [vmem:[%s1199 + $0x18] sm:$0xff]
        %v1204 = vld [vmem:[%s1199 + $0x20] sm:$0xff]
        %v1205 = vld [vmem:[%s1199 + $0x28] sm:$0xff]
        %v1206 = vld [vmem:[%s1199 + $0x30] sm:$0xff]
        %v1207 = vld [vmem:[%s1199 + $0x38] sm:$0xff]
        %v1208 = vld [vmem:[%s1199 + $0x40] sm:$0xff]
        %v1209 = vld [vmem:[%s1199 + $0x48] sm:$0xff]
        %v1210 = vld [vmem:[%s1199 + $0x50] sm:$0xff]
        %v1211 = vld [vmem:[%s1199 + $0x58] sm:$0xff]
        %v1212 = vld [vmem:[%s1199 + $0x60] sm:$0xff]
        %v1213 = vld [vmem:[%s1199 + $0x68] sm:$0xff]
        %v1214 = vld [vmem:[%s1199 + $0x70] sm:$0xff]
        %v1215 = vld [vmem:[%s1199 + $0x78] sm:$0xff]
        %s1216 = scalar_lea.vmem %s11, 2
        %v1217 = vld [vmem:[%s1216] sm:$0x3]
        %v1219 = vperm.slane %v1217, 0
        %v1220 = vperm.slane %v1217, 1
        %v1224 = vsel %vm791, %v760, 0
        %1226 = vmatpush.msra.mxu0 0.0
        %1227 = vmatpush.msra.mxu0 0.0
        %1228 = vmatpush.msra.mxu0 0.0
        %1229 = vmatpush.msra.mxu0 0.0
        %1230 = vmatpush.msra.mxu0 0.0
        %1231 = vmatpush.msra.mxu0 0.0
        %1232 = vmatpush.msra.mxu0 0.0
        %1233 = vmatpush.msra.mxu0 0.0
        %1234 = vmatpush.msra.mxu0 %v1214
        %1235 = vmatpush.msra.mxu0 %v1212
        %1236 = vmatpush.msra.mxu0 %v1210
        %1237 = vmatpush.msra.mxu0 %v1208
        %1238 = vmatpush.msra.mxu0 %v1206
        %1239 = vmatpush.msra.mxu0 %v1204
        %1240 = vmatpush.msra.mxu0 %v1202
        %1241 = vmatpush.msra.mxu0 %v1200
        %1242 = vmatmul.f32.gmra.mxu0 %v1224
        %v1243 = vpop.f32.mrf.mxu0
        %v1244 = vadd.f32 %v1219, %v1243
        %1245 = vdwg.mxu0
        %1246 = vmatpush.msra.mxu0 0.0
        %1247 = vmatpush.msra.mxu0 0.0
        %1248 = vmatpush.msra.mxu0 0.0
        %1249 = vmatpush.msra.mxu0 0.0
        %1250 = vmatpush.msra.mxu0 0.0
        %1251 = vmatpush.msra.mxu0 0.0
        %1252 = vmatpush.msra.mxu0 0.0
        %1253 = vmatpush.msra.mxu0 0.0
        %1254 = vmatpush.msra.mxu0 %v1215
        %1255 = vmatpush.msra.mxu0 %v1213
        %1256 = vmatpush.msra.mxu0 %v1211
        %1257 = vmatpush.msra.mxu0 %v1209
        %1258 = vmatpush.msra.mxu0 %v1207
        %1259 = vmatpush.msra.mxu0 %v1205
        %1260 = vmatpush.msra.mxu0 %v1203
        %1261 = vmatpush.msra.mxu0 %v1201
        %1262 = vmatmul.f32.gmra.mxu0 %v1224
        %v1263 = vpop.f32.mrf.mxu0
        %v1264 = vadd.f32 %v1220, %v1263
        %1265 = vdwg.mxu0
        %s1266 = scalar_lea.vmem [#allocation13], 256
        %v1267 = vld [vmem:[%s1266] sm:$0xff]
        %v1268 = vld [vmem:[%s1266 + $0x8] sm:$0xff]
        %v1269 = vld [vmem:[%s1266 + $0x10] sm:$0xff]
        %v1270 = vld [vmem:[%s1266 + $0x18] sm:$0xff]
        %v1271 = vld [vmem:[%s1266 + $0x20] sm:$0xff]
        %v1272 = vld [vmem:[%s1266 + $0x28] sm:$0xff]
        %v1273 = vld [vmem:[%s1266 + $0x30] sm:$0xff]
        %v1274 = vld [vmem:[%s1266 + $0x38] sm:$0xff]
        %v1275 = vld [vmem:[%s1266 + $0x40] sm:$0xff]
        %v1276 = vld [vmem:[%s1266 + $0x48] sm:$0xff]
        %v1277 = vld [vmem:[%s1266 + $0x50] sm:$0xff]
        %v1278 = vld [vmem:[%s1266 + $0x58] sm:$0xff]
        %v1279 = vld [vmem:[%s1266 + $0x60] sm:$0xff]
        %v1280 = vld [vmem:[%s1266 + $0x68] sm:$0xff]
        %v1281 = vld [vmem:[%s1266 + $0x70] sm:$0xff]
        %v1282 = vld [vmem:[%s1266 + $0x78] sm:$0xff]
        %s1283 = scalar_lea.vmem %s11, 4
        %v1284 = vld [vmem:[%s1283] sm:$0x3]
        %v1286 = vperm.slane %v1284, 0
        %v1287 = vperm.slane %v1284, 1
        %v1291 = vsel %vm791, %v761, 0
        %1293 = vmatpush.msra.mxu0 0.0
        %1294 = vmatpush.msra.mxu0 0.0
        %1295 = vmatpush.msra.mxu0 0.0
        %1296 = vmatpush.msra.mxu0 0.0
        %1297 = vmatpush.msra.mxu0 0.0
        %1298 = vmatpush.msra.mxu0 0.0
        %1299 = vmatpush.msra.mxu0 0.0
        %1300 = vmatpush.msra.mxu0 0.0
        %1301 = vmatpush.msra.mxu0 %v1281
        %1302 = vmatpush.msra.mxu0 %v1279
        %1303 = vmatpush.msra.mxu0 %v1277
        %1304 = vmatpush.msra.mxu0 %v1275
        %1305 = vmatpush.msra.mxu0 %v1273
        %1306 = vmatpush.msra.mxu0 %v1271
        %1307 = vmatpush.msra.mxu0 %v1269
        %1308 = vmatpush.msra.mxu0 %v1267
        %1309 = vmatmul.f32.gmra.mxu0 %v1291
        %v1310 = vpop.f32.mrf.mxu0
        %v1311 = vadd.f32 %v1286, %v1310
        %1312 = vdwg.mxu0
        %1313 = vmatpush.msra.mxu0 0.0
        %1314 = vmatpush.msra.mxu0 0.0
        %1315 = vmatpush.msra.mxu0 0.0
        %1316 = vmatpush.msra.mxu0 0.0
        %1317 = vmatpush.msra.mxu0 0.0
        %1318 = vmatpush.msra.mxu0 0.0
        %1319 = vmatpush.msra.mxu0 0.0
        %1320 = vmatpush.msra.mxu0 0.0
        %1321 = vmatpush.msra.mxu0 %v1282
        %1322 = vmatpush.msra.mxu0 %v1280
        %1323 = vmatpush.msra.mxu0 %v1278
        %1324 = vmatpush.msra.mxu0 %v1276
        %1325 = vmatpush.msra.mxu0 %v1274
        %1326 = vmatpush.msra.mxu0 %v1272
        %1327 = vmatpush.msra.mxu0 %v1270
        %1328 = vmatpush.msra.mxu0 %v1268
        %1329 = vmatmul.f32.gmra.mxu0 %v1291
        %v1330 = vpop.f32.mrf.mxu0
        %v1331 = vadd.f32 %v1287, %v1330
        %1332 = vdwg.mxu0
        %v1333 = vld [vmem:[#allocation11] sm:$0xff]
        %v1334 = vld [vmem:[#allocation11 + $0x8] sm:$0xff]
        %v1335 = vld [vmem:[#allocation11 + $0x10] sm:$0xff]
        %v1336 = vld [vmem:[#allocation11 + $0x18] sm:$0xff]
        %v1337 = vld [vmem:[#allocation11 + $0x20] sm:$0xff]
        %v1338 = vld [vmem:[#allocation11 + $0x28] sm:$0xff]
        %v1339 = vld [vmem:[#allocation11 + $0x30] sm:$0xff]
        %v1340 = vld [vmem:[#allocation11 + $0x38] sm:$0xff]
        %v1341 = vld [vmem:[#allocation11 + $0x40] sm:$0xff]
        %v1342 = vld [vmem:[#allocation11 + $0x48] sm:$0xff]
        %v1343 = vld [vmem:[#allocation11 + $0x50] sm:$0xff]
        %v1344 = vld [vmem:[#allocation11 + $0x58] sm:$0xff]
        %v1345 = vld [vmem:[#allocation11 + $0x60] sm:$0xff]
        %v1346 = vld [vmem:[#allocation11 + $0x68] sm:$0xff]
        %v1347 = vld [vmem:[#allocation11 + $0x70] sm:$0xff]
        %v1348 = vld [vmem:[#allocation11 + $0x78] sm:$0xff]
        %v1350 = vsel %vm791, %v1127, 0
        %1352 = vmatpush.msra.mxu0 0.0
        %1353 = vmatpush.msra.mxu0 0.0
        %1354 = vmatpush.msra.mxu0 0.0
        %1355 = vmatpush.msra.mxu0 0.0
        %1356 = vmatpush.msra.mxu0 0.0
        %1357 = vmatpush.msra.mxu0 0.0
        %1358 = vmatpush.msra.mxu0 0.0
        %1359 = vmatpush.msra.mxu0 0.0
        %1360 = vmatpush.msra.mxu0 %v1347
        %1361 = vmatpush.msra.mxu0 %v1345
        %1362 = vmatpush.msra.mxu0 %v1343
        %1363 = vmatpush.msra.mxu0 %v1341
        %1364 = vmatpush.msra.mxu0 %v1339
        %1365 = vmatpush.msra.mxu0 %v1337
        %1366 = vmatpush.msra.mxu0 %v1335
        %1367 = vmatpush.msra.mxu0 %v1333
        %1368 = vmatmul.f32.gmra.mxu0 %v1350
        %v1369 = vpop.f32.mrf.mxu0
        %v1370 = vadd.f32 %v1177, %v1369
        %1371 = vdwg.mxu0
        %1372 = vmatpush.msra.mxu0 0.0
        %1373 = vmatpush.msra.mxu0 0.0
        %1374 = vmatpush.msra.mxu0 0.0
        %1375 = vmatpush.msra.mxu0 0.0
        %1376 = vmatpush.msra.mxu0 0.0
        %1377 = vmatpush.msra.mxu0 0.0
        %1378 = vmatpush.msra.mxu0 0.0
        %1379 = vmatpush.msra.mxu0 0.0
        %1380 = vmatpush.msra.mxu0 %v1348
        %1381 = vmatpush.msra.mxu0 %v1346
        %1382 = vmatpush.msra.mxu0 %v1344
        %1383 = vmatpush.msra.mxu0 %v1342
        %1384 = vmatpush.msra.mxu0 %v1340
        %1385 = vmatpush.msra.mxu0 %v1338
        %1386 = vmatpush.msra.mxu0 %v1336
        %1387 = vmatpush.msra.mxu0 %v1334
        %1388 = vmatmul.f32.gmra.mxu0 %v1350
        %v1389 = vpop.f32.mrf.mxu0
        %v1390 = vadd.f32 %v1197, %v1389
        %1391 = vdwg.mxu0
        %v1392 = vxor.u32 %v1370, 2147483648
        %v1393 = vmul.f32 %v1392, 1.442695
        %v1394 = vpow.pop %v1393
        %v1395 = vadd.f32 %v1394, 1.0
        %v1396 = vrcp.pop %v1395
        %v1397 = vmul.f32 %v1395, %v1396
        %v1398 = vsub.f32 1.0, %v1397
        %v1399 = vmul.f32 %v1396, %v1398
        %v1400 = vadd.f32 %v1396, %v1399
        %vm1401 = vweird.f32 %v1395
        %vm1402 = vweird.f32 %v1396
        %vm1403 = vmor %vm1401, %vm1402
        %v1404 = vsel %vm1403, %v1396, %v1400
        %v1405 = vand.u32 2147483647, %v1395
        %vm1406 = vcmp.eq.f32.partialorder %v1405, 8.507059e+37
        %v1407 = vand.u32 %v1395, 2147483648
        %v1408 = vor.u32 1.1754944e-38, %v1407
        %v1409 = vsel %vm1406, %v1408, %v1404
        %v1410 = vmul.f32 1.0, %v1409
        %v1411 = vtanh.pop %v1390
        %v1412 = vxor.u32 %v1390, 2147483648
        %v1413 = vmul.f32 %v1412, 1.442695
        %v1414 = vpow.pop %v1413
        %v1415 = vadd.f32 %v1414, 1.0
        %v1416 = vrcp.pop %v1415
        %v1417 = vmul.f32 %v1415, %v1416
        %v1418 = vsub.f32 1.0, %v1417
        %v1419 = vmul.f32 %v1416, %v1418
        %v1420 = vadd.f32 %v1416, %v1419
        %vm1421 = vweird.f32 %v1415
        %vm1422 = vweird.f32 %v1416
        %vm1423 = vmor %vm1421, %vm1422
        %v1424 = vsel %vm1423, %v1416, %v1420
        %v1425 = vand.u32 2147483647, %v1415
        %vm1426 = vcmp.eq.f32.partialorder %v1425, 8.507059e+37
        %v1427 = vand.u32 %v1415, 2147483648
        %v1428 = vor.u32 1.1754944e-38, %v1427
        %v1429 = vsel %vm1426, %v1428, %v1424
        %v1430 = vmul.f32 1.0, %v1429
        %1432 = vrot.lane.b32.xlu0 %v763, 64
        %v1433 = vpop.permute.xlu0 %1432
        %v1435 = vmul.f32 %v1410, %v1433
        %v1436 = vmul.f32 %v1410, %v1411
        %1438 = vrot.lane.b32.xlu0 %v1436, 64
        %v1439 = vpop.permute.xlu0 %1438
        %v1441 = vadd.f32 %v1435, %v1439
        %v1442 = vtanh.pop %v1441
        %v1443 = vmul.f32 %v1430, %v1442
        %s1444 = scalar_lea.vmem [#allocation11], 128
        %v1445 = vld [vmem:[%s1444] sm:$0xff]
        %v1446 = vld [vmem:[%s1444 + $0x8] sm:$0xff]
        %v1447 = vld [vmem:[%s1444 + $0x10] sm:$0xff]
        %v1448 = vld [vmem:[%s1444 + $0x18] sm:$0xff]
        %v1449 = vld [vmem:[%s1444 + $0x20] sm:$0xff]
        %v1450 = vld [vmem:[%s1444 + $0x28] sm:$0xff]
        %v1451 = vld [vmem:[%s1444 + $0x30] sm:$0xff]
        %v1452 = vld [vmem:[%s1444 + $0x38] sm:$0xff]
        %v1453 = vld [vmem:[%s1444 + $0x40] sm:$0xff]
        %v1454 = vld [vmem:[%s1444 + $0x48] sm:$0xff]
        %v1455 = vld [vmem:[%s1444 + $0x50] sm:$0xff]
        %v1456 = vld [vmem:[%s1444 + $0x58] sm:$0xff]
        %v1457 = vld [vmem:[%s1444 + $0x60] sm:$0xff]
        %v1458 = vld [vmem:[%s1444 + $0x68] sm:$0xff]
        %v1459 = vld [vmem:[%s1444 + $0x70] sm:$0xff]
        %v1460 = vld [vmem:[%s1444 + $0x78] sm:$0xff]
        %1462 = vrot.lane.b32.xlu0 %v1443, 64
        %v1463 = vpop.permute.xlu0 %1462
        %v1464 = vsel %vm791, %v1463, 0
        %1466 = vmatpush.msra.mxu0 0.0
        %1467 = vmatpush.msra.mxu0 0.0
        %1468 = vmatpush.msra.mxu0 0.0
        %1469 = vmatpush.msra.mxu0 0.0
        %1470 = vmatpush.msra.mxu0 0.0
        %1471 = vmatpush.msra.mxu0 0.0
        %1472 = vmatpush.msra.mxu0 0.0
        %1473 = vmatpush.msra.mxu0 0.0
        %1474 = vmatpush.msra.mxu0 %v1459
        %1475 = vmatpush.msra.mxu0 %v1457
        %1476 = vmatpush.msra.mxu0 %v1455
        %1477 = vmatpush.msra.mxu0 %v1453
        %1478 = vmatpush.msra.mxu0 %v1451
        %1479 = vmatpush.msra.mxu0 %v1449
        %1480 = vmatpush.msra.mxu0 %v1447
        %1481 = vmatpush.msra.mxu0 %v1445
        %1482 = vmatmul.f32.gmra.mxu0 %v1464
        %v1483 = vpop.f32.mrf.mxu0
        %v1484 = vadd.f32 %v1244, %v1483
        %1485 = vdwg.mxu0
        %1486 = vmatpush.msra.mxu0 0.0
        %1487 = vmatpush.msra.mxu0 0.0
        %1488 = vmatpush.msra.mxu0 0.0
        %1489 = vmatpush.msra.mxu0 0.0
        %1490 = vmatpush.msra.mxu0 0.0
        %1491 = vmatpush.msra.mxu0 0.0
        %1492 = vmatpush.msra.mxu0 0.0
        %1493 = vmatpush.msra.mxu0 0.0
        %1494 = vmatpush.msra.mxu0 %v1460
        %1495 = vmatpush.msra.mxu0 %v1458
        %1496 = vmatpush.msra.mxu0 %v1456
        %1497 = vmatpush.msra.mxu0 %v1454
        %1498 = vmatpush.msra.mxu0 %v1452
        %1499 = vmatpush.msra.mxu0 %v1450
        %1500 = vmatpush.msra.mxu0 %v1448
        %1501 = vmatpush.msra.mxu0 %v1446
        %1502 = vmatmul.f32.gmra.mxu0 %v1464
        %v1503 = vpop.f32.mrf.mxu0
        %v1504 = vadd.f32 %v1264, %v1503
        %1505 = vdwg.mxu0
        %v1506 = vxor.u32 %v1484, 2147483648
        %v1507 = vmul.f32 %v1506, 1.442695
        %v1508 = vpow.pop %v1507
        %v1509 = vadd.f32 %v1508, 1.0
        %v1510 = vrcp.pop %v1509
        %v1511 = vmul.f32 %v1509, %v1510
        %v1512 = vsub.f32 1.0, %v1511
        %v1513 = vmul.f32 %v1510, %v1512
        %v1514 = vadd.f32 %v1510, %v1513
        %vm1515 = vweird.f32 %v1509
        %vm1516 = vweird.f32 %v1510
        %vm1517 = vmor %vm1515, %vm1516
        %v1518 = vsel %vm1517, %v1510, %v1514
        %v1519 = vand.u32 2147483647, %v1509
        %vm1520 = vcmp.eq.f32.partialorder %v1519, 8.507059e+37
        %v1521 = vand.u32 %v1509, 2147483648
        %v1522 = vor.u32 1.1754944e-38, %v1521
        %v1523 = vsel %vm1520, %v1522, %v1518
        %v1524 = vmul.f32 1.0, %v1523
        %v1525 = vtanh.pop %v1504
        %v1526 = vxor.u32 %v1504, 2147483648
        %v1527 = vmul.f32 %v1526, 1.442695
        %v1528 = vpow.pop %v1527
        %v1529 = vadd.f32 %v1528, 1.0
        %v1530 = vrcp.pop %v1529
        %v1531 = vmul.f32 %v1529, %v1530
        %v1532 = vsub.f32 1.0, %v1531
        %v1533 = vmul.f32 %v1530, %v1532
        %v1534 = vadd.f32 %v1530, %v1533
        %vm1535 = vweird.f32 %v1529
        %vm1536 = vweird.f32 %v1530
        %vm1537 = vmor %vm1535, %vm1536
        %v1538 = vsel %vm1537, %v1530, %v1534
        %v1539 = vand.u32 2147483647, %v1529
        %vm1540 = vcmp.eq.f32.partialorder %v1539, 8.507059e+37
        %v1541 = vand.u32 %v1529, 2147483648
        %v1542 = vor.u32 1.1754944e-38, %v1541
        %v1543 = vsel %vm1540, %v1542, %v1538
        %v1544 = vmul.f32 1.0, %v1543
        %1546 = vrot.lane.b32.xlu0 %v764, 64
        %v1547 = vpop.permute.xlu0 %1546
        %v1549 = vmul.f32 %v1524, %v1547
        %v1550 = vmul.f32 %v1524, %v1525
        %1552 = vrot.lane.b32.xlu0 %v1550, 64
        %v1553 = vpop.permute.xlu0 %1552
        %v1555 = vadd.f32 %v1549, %v1553
        %v1556 = vtanh.pop %v1555
        %v1557 = vmul.f32 %v1544, %v1556
        %s1558 = scalar_lea.vmem [#allocation11], 256
        %v1559 = vld [vmem:[%s1558] sm:$0xff]
        %v1560 = vld [vmem:[%s1558 + $0x8] sm:$0xff]
        %v1561 = vld [vmem:[%s1558 + $0x10] sm:$0xff]
        %v1562 = vld [vmem:[%s1558 + $0x18] sm:$0xff]
        %v1563 = vld [vmem:[%s1558 + $0x20] sm:$0xff]
        %v1564 = vld [vmem:[%s1558 + $0x28] sm:$0xff]
        %v1565 = vld [vmem:[%s1558 + $0x30] sm:$0xff]
        %v1566 = vld [vmem:[%s1558 + $0x38] sm:$0xff]
        %v1567 = vld [vmem:[%s1558 + $0x40] sm:$0xff]
        %v1568 = vld [vmem:[%s1558 + $0x48] sm:$0xff]
        %v1569 = vld [vmem:[%s1558 + $0x50] sm:$0xff]
        %v1570 = vld [vmem:[%s1558 + $0x58] sm:$0xff]
        %v1571 = vld [vmem:[%s1558 + $0x60] sm:$0xff]
        %v1572 = vld [vmem:[%s1558 + $0x68] sm:$0xff]
        %v1573 = vld [vmem:[%s1558 + $0x70] sm:$0xff]
        %v1574 = vld [vmem:[%s1558 + $0x78] sm:$0xff]
        %1576 = vrot.lane.b32.xlu0 %v1557, 64
        %v1577 = vpop.permute.xlu0 %1576
        %v1578 = vsel %vm791, %v1577, 0
        %1580 = vmatpush.msra.mxu0 0.0
        %1581 = vmatpush.msra.mxu0 0.0
        %1582 = vmatpush.msra.mxu0 0.0
        %1583 = vmatpush.msra.mxu0 0.0
        %1584 = vmatpush.msra.mxu0 0.0
        %1585 = vmatpush.msra.mxu0 0.0
        %1586 = vmatpush.msra.mxu0 0.0
        %1587 = vmatpush.msra.mxu0 0.0
        %1588 = vmatpush.msra.mxu0 %v1573
        %1589 = vmatpush.msra.mxu0 %v1571
        %1590 = vmatpush.msra.mxu0 %v1569
        %1591 = vmatpush.msra.mxu0 %v1567
        %1592 = vmatpush.msra.mxu0 %v1565
        %1593 = vmatpush.msra.mxu0 %v1563
        %1594 = vmatpush.msra.mxu0 %v1561
        %1595 = vmatpush.msra.mxu0 %v1559
        %1596 = vmatmul.f32.gmra.mxu0 %v1578
        %v1597 = vpop.f32.mrf.mxu0
        %v1598 = vadd.f32 %v1311, %v1597
        %1599 = vdwg.mxu0
        %1600 = vmatpush.msra.mxu0 0.0
        %1601 = vmatpush.msra.mxu0 0.0
        %1602 = vmatpush.msra.mxu0 0.0
        %1603 = vmatpush.msra.mxu0 0.0
        %1604 = vmatpush.msra.mxu0 0.0
        %1605 = vmatpush.msra.mxu0 0.0
        %1606 = vmatpush.msra.mxu0 0.0
        %1607 = vmatpush.msra.mxu0 0.0
        %1608 = vmatpush.msra.mxu0 %v1574
        %1609 = vmatpush.msra.mxu0 %v1572
        %1610 = vmatpush.msra.mxu0 %v1570
        %1611 = vmatpush.msra.mxu0 %v1568
        %1612 = vmatpush.msra.mxu0 %v1566
        %1613 = vmatpush.msra.mxu0 %v1564
        %1614 = vmatpush.msra.mxu0 %v1562
        %1615 = vmatpush.msra.mxu0 %v1560
        %1616 = vmatmul.f32.gmra.mxu0 %v1578
        %v1617 = vpop.f32.mrf.mxu0
        %v1618 = vadd.f32 %v1331, %v1617
        %1619 = vdwg.mxu0
        %v1620 = vxor.u32 %v1598, 2147483648
        %v1621 = vmul.f32 %v1620, 1.442695
        %v1622 = vpow.pop %v1621
        %v1623 = vadd.f32 %v1622, 1.0
        %v1624 = vrcp.pop %v1623
        %v1625 = vmul.f32 %v1623, %v1624
        %v1626 = vsub.f32 1.0, %v1625
        %v1627 = vmul.f32 %v1624, %v1626
        %v1628 = vadd.f32 %v1624, %v1627
        %vm1629 = vweird.f32 %v1623
        %vm1630 = vweird.f32 %v1624
        %vm1631 = vmor %vm1629, %vm1630
        %v1632 = vsel %vm1631, %v1624, %v1628
        %v1633 = vand.u32 2147483647, %v1623
        %vm1634 = vcmp.eq.f32.partialorder %v1633, 8.507059e+37
        %v1635 = vand.u32 %v1623, 2147483648
        %v1636 = vor.u32 1.1754944e-38, %v1635
        %v1637 = vsel %vm1634, %v1636, %v1632
        %v1638 = vmul.f32 1.0, %v1637
        %v1639 = vtanh.pop %v1618
        %v1640 = vxor.u32 %v1618, 2147483648
        %v1641 = vmul.f32 %v1640, 1.442695
        %v1642 = vpow.pop %v1641
        %v1643 = vadd.f32 %v1642, 1.0
        %v1644 = vrcp.pop %v1643
        %v1645 = vmul.f32 %v1643, %v1644
        %v1646 = vsub.f32 1.0, %v1645
        %v1647 = vmul.f32 %v1644, %v1646
        %v1648 = vadd.f32 %v1644, %v1647
        %vm1649 = vweird.f32 %v1643
        %vm1650 = vweird.f32 %v1644
        %vm1651 = vmor %vm1649, %vm1650
        %v1652 = vsel %vm1651, %v1644, %v1648
        %v1653 = vand.u32 2147483647, %v1643
        %vm1654 = vcmp.eq.f32.partialorder %v1653, 8.507059e+37
        %v1655 = vand.u32 %v1643, 2147483648
        %v1656 = vor.u32 1.1754944e-38, %v1655
        %v1657 = vsel %vm1654, %v1656, %v1652
        %v1658 = vmul.f32 1.0, %v1657
        %1660 = vrot.lane.b32.xlu0 %v765, 64
        %v1661 = vpop.permute.xlu0 %1660
        %v1663 = vmul.f32 %v1638, %v1661
        %v1664 = vmul.f32 %v1638, %v1639
        %1666 = vrot.lane.b32.xlu0 %v1664, 64
        %v1667 = vpop.permute.xlu0 %1666
        %v1669 = vadd.f32 %v1663, %v1667
        %v1670 = vtanh.pop %v1669
        %v1671 = vmul.f32 %v1658, %v1670
        %v1672 = vadd.f32 %v1557, %v1671
        %s1673 = scalar_lea.vmem [#allocation11], 384
        %v1674 = vld [vmem:[%s1673] sm:$0xff]
        %v1675 = vld [vmem:[%s1673 + $0x8] sm:$0xff]
        %v1676 = vld [vmem:[%s1673 + $0x10] sm:$0xff]
        %v1677 = vld [vmem:[%s1673 + $0x18] sm:$0xff]
        %v1678 = vld [vmem:[%s1673 + $0x20] sm:$0xff]
        %v1679 = vld [vmem:[%s1673 + $0x28] sm:$0xff]
        %v1680 = vld [vmem:[%s1673 + $0x30] sm:$0xff]
        %v1681 = vld [vmem:[%s1673 + $0x38] sm:$0xff]
        %v1682 = vld [vmem:[%s1673 + $0x40] sm:$0xff]
        %v1683 = vld [vmem:[%s1673 + $0x48] sm:$0xff]
        %v1684 = vld [vmem:[%s1673 + $0x50] sm:$0xff]
        %v1685 = vld [vmem:[%s1673 + $0x58] sm:$0xff]
        %v1686 = vld [vmem:[%s1673 + $0x60] sm:$0xff]
        %v1687 = vld [vmem:[%s1673 + $0x68] sm:$0xff]
        %v1688 = vld [vmem:[%s1673 + $0x70] sm:$0xff]
        %v1689 = vld [vmem:[%s1673 + $0x78] sm:$0xff]
        %1691 = vrot.lane.b32.xlu0 %v1672, 64
        %v1692 = vpop.permute.xlu0 %1691
        %v1693 = vsel %vm791, %v1692, 0
        %1695 = vmatpush.msra.mxu0 0.0
        %1696 = vmatpush.msra.mxu0 0.0
        %1697 = vmatpush.msra.mxu0 0.0
        %1698 = vmatpush.msra.mxu0 0.0
        %1699 = vmatpush.msra.mxu0 0.0
        %1700 = vmatpush.msra.mxu0 0.0
        %1701 = vmatpush.msra.mxu0 0.0
        %1702 = vmatpush.msra.mxu0 0.0
        %1703 = vmatpush.msra.mxu0 %v1688
        %1704 = vmatpush.msra.mxu0 %v1686
        %1705 = vmatpush.msra.mxu0 %v1684
        %1706 = vmatpush.msra.mxu0 %v1682
        %1707 = vmatpush.msra.mxu0 %v1680
        %1708 = vmatpush.msra.mxu0 %v1678
        %1709 = vmatpush.msra.mxu0 %v1676
        %1710 = vmatpush.msra.mxu0 %v1674
        %1711 = vmatmul.f32.gmra.mxu0 %v1693
        %v1712 = vpop.f32.mrf.mxu0
        %v1713 = vadd.f32 %v862, %v1712
        %1714 = vdwg.mxu0
        %1715 = vmatpush.msra.mxu0 0.0
        %1716 = vmatpush.msra.mxu0 0.0
        %1717 = vmatpush.msra.mxu0 0.0
        %1718 = vmatpush.msra.mxu0 0.0
        %1719 = vmatpush.msra.mxu0 0.0
        %1720 = vmatpush.msra.mxu0 0.0
        %1721 = vmatpush.msra.mxu0 0.0
        %1722 = vmatpush.msra.mxu0 0.0
        %1723 = vmatpush.msra.mxu0 %v1689
        %1724 = vmatpush.msra.mxu0 %v1687
        %1725 = vmatpush.msra.mxu0 %v1685
        %1726 = vmatpush.msra.mxu0 %v1683
        %1727 = vmatpush.msra.mxu0 %v1681
        %1728 = vmatpush.msra.mxu0 %v1679
        %1729 = vmatpush.msra.mxu0 %v1677
        %1730 = vmatpush.msra.mxu0 %v1675
        %1731 = vmatmul.f32.gmra.mxu0 %v1693
        %v1732 = vpop.f32.mrf.mxu0
        %v1733 = vadd.f32 %v863, %v1732
        %1734 = vdwg.mxu0
        %v1735 = vxor.u32 %v1713, 2147483648
        %v1736 = vmul.f32 %v1735, 1.442695
        %v1737 = vpow.pop %v1736
        %v1738 = vadd.f32 %v1737, 1.0
        %v1739 = vrcp.pop %v1738
        %v1740 = vmul.f32 %v1738, %v1739
        %v1741 = vsub.f32 1.0, %v1740
        %v1742 = vmul.f32 %v1739, %v1741
        %v1743 = vadd.f32 %v1739, %v1742
        %vm1744 = vweird.f32 %v1738
        %vm1745 = vweird.f32 %v1739
        %vm1746 = vmor %vm1744, %vm1745
        %v1747 = vsel %vm1746, %v1739, %v1743
        %v1748 = vand.u32 2147483647, %v1738
        %vm1749 = vcmp.eq.f32.partialorder %v1748, 8.507059e+37
        %v1750 = vand.u32 %v1738, 2147483648
        %v1751 = vor.u32 1.1754944e-38, %v1750
        %v1752 = vsel %vm1749, %v1751, %v1747
        %v1753 = vmul.f32 1.0, %v1752
        %v1754 = vtanh.pop %v1733
        %v1755 = vxor.u32 %v1733, 2147483648
        %v1756 = vmul.f32 %v1755, 1.442695
        %v1757 = vpow.pop %v1756
        %v1758 = vadd.f32 %v1757, 1.0
        %v1759 = vrcp.pop %v1758
        %v1760 = vmul.f32 %v1758, %v1759
        %v1761 = vsub.f32 1.0, %v1760
        %v1762 = vmul.f32 %v1759, %v1761
        %v1763 = vadd.f32 %v1759, %v1762
        %vm1764 = vweird.f32 %v1758
        %vm1765 = vweird.f32 %v1759
        %vm1766 = vmor %vm1764, %vm1765
        %v1767 = vsel %vm1766, %v1759, %v1763
        %v1768 = vand.u32 2147483647, %v1758
        %vm1769 = vcmp.eq.f32.partialorder %v1768, 8.507059e+37
        %v1770 = vand.u32 %v1758, 2147483648
        %v1771 = vor.u32 1.1754944e-38, %v1770
        %v1772 = vsel %vm1769, %v1771, %v1767
        %v1773 = vmul.f32 1.0, %v1772
        %1775 = vrot.lane.b32.xlu0 %v766, 64
        %v1776 = vpop.permute.xlu0 %1775
        %v1778 = vmul.f32 %v1753, %v1776
        %v1779 = vmul.f32 %v1753, %v1754
        %1781 = vrot.lane.b32.xlu0 %v1779, 64
        %v1782 = vpop.permute.xlu0 %1781
        %v1784 = vadd.f32 %v1778, %v1782
        %v1785 = vtanh.pop %v1784
        %v1786 = vmul.f32 %v1773, %v1785
        %v1787 = vld [vmem:[#allocation19] sm:$0xff]
        %v1788 = vld [vmem:[#allocation19 + $0x8] sm:$0xff]
        %v1789 = vld [vmem:[#allocation19 + $0x10] sm:$0xff]
        %v1790 = vld [vmem:[#allocation19 + $0x18] sm:$0xff]
        %v1791 = vld [vmem:[#allocation19 + $0x20] sm:$0xff]
        %v1792 = vld [vmem:[#allocation19 + $0x28] sm:$0xff]
        %v1793 = vld [vmem:[#allocation19 + $0x30] sm:$0xff]
        %v1794 = vld [vmem:[#allocation19 + $0x38] sm:$0xff]
        %1796 = vrot.lane.b32.xlu0 %v1786, 64
        %v1797 = vpop.permute.xlu0 %1796
        %v1798 = vsel %vm791, %v1797, 0
        %1800 = vmatpush.msra.mxu0 0.0
        %1801 = vmatpush.msra.mxu0 0.0
        %1802 = vmatpush.msra.mxu0 0.0
        %1803 = vmatpush.msra.mxu0 0.0
        %1804 = vmatpush.msra.mxu0 0.0
        %1805 = vmatpush.msra.mxu0 0.0
        %1806 = vmatpush.msra.mxu0 0.0
        %1807 = vmatpush.msra.mxu0 0.0
        %1808 = vmatpush.msra.mxu0 %v1794
        %1809 = vmatpush.msra.mxu0 %v1793
        %1810 = vmatpush.msra.mxu0 %v1792
        %1811 = vmatpush.msra.mxu0 %v1791
        %1812 = vmatpush.msra.mxu0 %v1790
        %1813 = vmatpush.msra.mxu0 %v1789
        %1814 = vmatpush.msra.mxu0 %v1788
        %1815 = vmatpush.msra.mxu0 %v1787
        %1816 = vmatmul.f32.gmra.mxu0 %v1798
        %v1817 = vpop.f32.mrf.mxu0
        %v1818 = vadd.f32 0.0, %v1817
        %1819 = vdwg.mxu0
        %v1820 = vadd.f32 %v1133, %v1818
        %vm1821 = vcmask 1041408
        %v1822 = vsel %vm1821, %v1820, -inf
        %1823 = vmax.xlane.f32.xlu0 %v1822
        %v1824 = vpop.xlane.xlu0 %1823
        %v1825 = vsub.f32 %v1820, %v1824
        %v1826 = vmul.f32 %v1825, 1.442695
        %v1827 = vpow.pop %v1826
        %v1828 = vsel %vm1821, %v1827, 0.0
        %1829 = vadd.xlane.f32.xlu0 %v1828
        %v1830 = vpop.xlane.xlu0 %1829
        %v1831 = vrcp.pop %v1830
        %v1832 = vmul.f32 %v1830, %v1831
        %v1833 = vsub.f32 1.0, %v1832
        %v1834 = vmul.f32 %v1831, %v1833
        %v1835 = vadd.f32 %v1831, %v1834
        %vm1836 = vweird.f32 %v1830
        %vm1837 = vweird.f32 %v1831
        %vm1838 = vmor %vm1836, %vm1837
        %v1839 = vsel %vm1838, %v1831, %v1835
        %v1840 = vand.u32 2147483647, %v1830
        %vm1841 = vcmp.eq.f32.partialorder %v1840, 8.507059e+37
        %v1842 = vand.u32 %v1830, 2147483648
        %v1843 = vor.u32 1.1754944e-38, %v1842
        %v1844 = vsel %vm1841, %v1843, %v1839
        %v1845 = vmul.f32 %v1827, %v1844
        %1846 = vst [vmem:[%s723] sm:$0x3] %v1845
        %vm1848 = vcmask 517120
        %1849 = vst.msk [vmem:[#allocation23] sm:$0x3] %vm1848, %v1463
        %s1851 = scalar_lea.vmem [#allocation23], 2
        %1852 = vst.msk [vmem:[%s1851] sm:$0x3] %vm1848, %v1577
        %1854 = vrot.lane.b32.xlu0 %v1671, 64
        %v1855 = vpop.permute.xlu0 %1854
        %s1857 = scalar_lea.vmem [#allocation23], 4
        %1858 = vst.msk [vmem:[%s1857] sm:$0x3] %vm1848, %v1855
        %s1860 = scalar_lea.vmem [#allocation23], 6
        %1861 = vst.msk [vmem:[%s1860] sm:$0x3] %vm1848, %v1797
        %1863 = vrot.lane.b32.xlu0 %v1441, 64
        %v1864 = vpop.permute.xlu0 %1863
        %1866 = vst.msk [vmem:[#allocation24] sm:$0x3] %vm1848, %v1864
        %1868 = vrot.lane.b32.xlu0 %v1555, 64
        %v1869 = vpop.permute.xlu0 %1868
        %s1871 = scalar_lea.vmem [#allocation24], 2
        %1872 = vst.msk [vmem:[%s1871] sm:$0x3] %vm1848, %v1869
        %1874 = vrot.lane.b32.xlu0 %v1669, 64
        %v1875 = vpop.permute.xlu0 %1874
        %s1877 = scalar_lea.vmem [#allocation24], 4
        %1878 = vst.msk [vmem:[%s1877] sm:$0x3] %vm1848, %v1875
        %1880 = vrot.lane.b32.xlu0 %v1784, 64
        %v1881 = vpop.permute.xlu0 %1880
        %s1883 = scalar_lea.vmem [#allocation24], 6
        %1884 = vst.msk [vmem:[%s1883] sm:$0x3] %vm1848, %v1881
        %s1885 = sand.u32 %s351, 1
        %s1886 = scalar_lea.sflag [#allocation4], %s1885
        %s1887 = sand.u32 %s351, 1
        %s1888 = smul.addr %s1887, 2
        %s1889 = scalar_lea.vmem [#allocation20], %s1888
        %s1890 = sand.u32 %s44, 1
        %s1891 = scalar_lea.sflag [#allocation22], %s1890
        %s1892 = sand.u32 %s377, 1
        %s1893 = smul.addr %s1892, 2
        %s1894 = scalar_lea.vmem [#allocation21], %s1893
        // Predicated region
        $region125: #{tpu_custom_call.1} parent=75 // pred_check
          %p1895 = pneg %p361
        $region126: #{tpu_custom_call.1} parent=75 // pred_check_branch
          %1897 = sbr.rel (%p1895) target = $region128
        $region127: #{tpu_custom_call.1} parent=75 // pred_region
          %1899 = vsyncadd %s1886, 0
          %s1900 = smul.addr %s44, 2
          %s1901 = scalar_lea.hbm %s14, %s1900
          %s1903 = sshll.u32 %s1889, 4
          %s1904 = int_to_ptr.vmem [resolvable:$true] %s1903
          %s1905 = sshll.u32 %s1901, 4
          %s1906 = int_to_ptr.hbm [resolvable:$true] %s1905
          %1908 = dma.vmem_to_hbm [thread:$0]  %s1904, 32, %s1906, %s1886
        $region128: #{tpu_custom_call.1} parent=75 // pred_fallthru
          _
        // Predicated region
        $region129: #{tpu_custom_call.1} parent=75 // pred_check
          %p1909 = pneg %p387
        $region130: #{tpu_custom_call.1} parent=75 // pred_check_branch
          %1911 = sbr.rel (%p1909) target = $region132
        $region131: #{tpu_custom_call.1} parent=75 // pred_region
          %1913 = vsyncadd %s1891, 0
          %s1914 = smul.addr %s44, 2
          %s1915 = scalar_lea.hbm %s15, %s1914
          %s1917 = sshll.u32 %s1894, 4
          %s1918 = int_to_ptr.vmem [resolvable:$true] %s1917
          %s1919 = sshll.u32 %s1915, 4
          %s1920 = int_to_ptr.hbm [resolvable:$true] %s1919
          %1922 = dma.vmem_to_hbm [thread:$0]  %s1918, 32, %s1920, %s1891
        $region132: #{tpu_custom_call.1} parent=75 // pred_fallthru
          _
        // Predicated region
        $region133: #{tpu_custom_call.1} parent=75 // pred_check
          %p1923 = pneg %p408
        $region134: #{tpu_custom_call.1} parent=75 // pred_check_branch
          %1925 = sbr.rel (%p1923) target = $region136
        $region135: #{tpu_custom_call.1} parent=75 // pred_region
          %1927 = vsyncadd [#allocation22], 0
          %s1928 = sshll.u32 [#allocation23], 4
          %s1929 = int_to_ptr.vmem [resolvable:$true] %s1928
          %s1930 = sshll.u32 %s16, 4
          %s1931 = int_to_ptr.hbm [resolvable:$true] %s1930
          %1936 = dma.vmem_to_hbm [thread:$0]  %s1929, 128, %s1931, [#allocation22], 32, 32, 2
        $region136: #{tpu_custom_call.1} parent=75 // pred_fallthru
          _
        // Predicated region
        $region137: #{tpu_custom_call.1} parent=75 // pred_check
          %p1937 = pneg %p429
        $region138: #{tpu_custom_call.1} parent=75 // pred_check_branch
          %1939 = sbr.rel (%p1937) target = $region140
        $region139: #{tpu_custom_call.1} parent=75 // pred_region
          %1941 = vsyncadd [#allocation25], 0
          %s1942 = sshll.u32 [#allocation24], 4
          %s1943 = int_to_ptr.vmem [resolvable:$true] %s1942
          %s1944 = sshll.u32 %s17, 4
          %s1945 = int_to_ptr.hbm [resolvable:$true] %s1944
          %1950 = dma.vmem_to_hbm [thread:$0]  %s1943, 128, %s1945, [#allocation25], 32, 32, 2
        $region140: #{tpu_custom_call.1} parent=75 // pred_fallthru
          _
        // Predicated region
        $region141: #{tpu_custom_call.1} parent=75 // pred_check
          %p1951 = pneg %p408
        $region142: #{tpu_custom_call.1} parent=75 // pred_check_branch
          %1953 = sbr.rel (%p1951) target = $region144
        $region143: #{tpu_custom_call.1} parent=75 // pred_region
          %1955 = dma.done [#allocation22], 128
        $region144: #{tpu_custom_call.1} parent=75 // pred_fallthru
          _
        // Predicated region
        $region145: #{tpu_custom_call.1} parent=75 // pred_check
          %p1956 = pneg %p429
        $region146: #{tpu_custom_call.1} parent=75 // pred_check_branch
          %1958 = sbr.rel (%p1956) target = $region148
        $region147: #{tpu_custom_call.1} parent=75 // pred_region
          %1960 = dma.done [#allocation25], 128
        $region148: #{tpu_custom_call.1} parent=75 // pred_fallthru
          _
      $region76: #{tpu_custom_call.1} parent=5 // pred_fallthru
        _
      %p1961 = scmp.le.s32.totalorder 2, %s39
      // Predicated region
      $region149: #{tpu_custom_call.1} parent=5 // pred_check
        %p1962 = pneg %p1961
      $region150: #{tpu_custom_call.1} parent=5 // pred_check_branch
        %1964 = sbr.rel (%p1962) target = $region152
      $region151: #{tpu_custom_call.1} parent=5 // pred_region
        %s1965 = ssub.s32 %s39, 2
        // Predicated region
        $region153: #{tpu_custom_call.1} parent=151 // pred_check
          %p1966 = pneg %p367
        $region154: #{tpu_custom_call.1} parent=151 // pred_check_branch
          %1968 = sbr.rel (%p1966) target = $region156
        $region155: #{tpu_custom_call.1} parent=151 // pred_region
          %s1969 = sand.u32 %s352, 1
          %s1970 = scalar_lea.sflag [#allocation4], %s1969
          %s1971 = sand.u32 %s352, 1
          %s1972 = smul.addr %s1971, 2
          %s1973 = scalar_lea.vmem [#allocation20], %s1972
          %1975 = dma.done %s1970, 32
        $region156: #{tpu_custom_call.1} parent=151 // pred_fallthru
          _
        // Predicated region
        $region157: #{tpu_custom_call.1} parent=151 // pred_check
          %p1976 = pneg %p393
        $region158: #{tpu_custom_call.1} parent=151 // pred_check_branch
          %1978 = sbr.rel (%p1976) target = $region160
        $region159: #{tpu_custom_call.1} parent=151 // pred_region
          %s1979 = sand.u32 %s45, 1
          %s1980 = scalar_lea.sflag [#allocation22], %s1979
          %s1981 = sand.u32 %s378, 1
          %s1982 = smul.addr %s1981, 2
          %s1983 = scalar_lea.vmem [#allocation21], %s1982
          %1985 = dma.done %s1980, 32
        $region160: #{tpu_custom_call.1} parent=151 // pred_fallthru
          _
      $region152: #{tpu_custom_call.1} parent=5 // pred_fallthru
        _
    $region6: #{tpu_custom_call.1} parent=1 // loop_footer
      %s43 = sadd.s32 1, %s39
    $region7: #{tpu_custom_call.1} parent=1 // loop_footer_branch
      %38 = sbr.rel target = $region3
    $region8: #{tpu_custom_call.1} parent=1 // loop_exit
      _
    %1986 = vsyncpa [#allocation3], 1
    %s1987 = scalar_lea.sflag [#allocation3], 1
    %1988 = vsyncpa %s1987, 1
    %1989 = vsyncpa [#allocation6], 1
    %1990 = vsyncpa [#allocation9], 1
    %1991 = vsyncpa [#allocation12], 1
    %1992 = vsyncpa [#allocation15], 1
    %1993 = vsyncpa [#allocation18], 1
    %1994 = vsyncpa [#allocation4], 1
    %s1995 = scalar_lea.sflag [#allocation4], 1
    %1996 = vsyncpa %s1995, 1
    %1997 = vsyncpa [#allocation22], 1
    %s1998 = scalar_lea.sflag [#allocation22], 1
    %1999 = vsyncpa %s1998, 1
    %2000 = vsyncpa [#allocation25], 1

</llo_original>
